<compile_context>
chip_gen: v7x
topology: tpu7x:2x2x1
jax: 0.10.0
libtpu: 0.0.40
codegen_flags: <defaults>
</compile_context>

<pallas_src>
import functools

import jax
import jax.numpy as jnp
import numpy as np
from jax.experimental import pallas as pl
from jax.experimental.pallas import tpu as pltpu


def _round_up(x, m):
    return (x + m - 1) // m * m


def _pick_batch_fold(batch, n_pad):
    """Fold TB batches per grid step to push the head-matmul M dim toward ~256
    rows, but keep at least two batch tiles when possible (v7x has 2 TCs)."""
    tb = 1
    while (tb * 2 <= batch and batch % (tb * 2) == 0
           and tb * 2 * n_pad <= 256 and batch // (tb * 2) >= 2):
        tb *= 2
    return tb


# ---------------------------------------------------------------------------
# Fused kernel: for grid point (b_tile, s)
#   cur = x[b_tile]                               (TB*N_pad, D_pad), f32
#   for o in range(order):
#       cur  = (1 + eps) * cur + A[s] @ cur       (per folded batch)
#       slab_o = bf16(cur)
#   acc += [slab_0 | ... | slab_{order-1}] @ Wpacked[s]
#   on last s:  out[b_tile] = relu(acc * bn_scale + bn_shift) @ W2^T + b2
# ---------------------------------------------------------------------------
def fused_gin_kernel(eps_ref, x_ref, a_ref, w_ref, scale_ref, shift_ref,
                     w2t_ref, b2_ref, out_ref, acc_ref, *, order, tb, n_pad,
                     d_pad):
    s = pl.program_id(1)

    @pl.when(s == 0)
    def _init():
        acc_ref[...] = jnp.zeros_like(acc_ref)

    one_plus_eps = 1.0 + eps_ref[0]                 # f32 scalar from SMEM
    a = a_ref[s]                                    # (N_pad, N_pad) bf16, VMEM-resident
    rows = tb * n_pad
    cur = x_ref[...].reshape(rows, d_pad)           # (TB*N_pad, D_pad) f32
    cur_bf = cur.astype(jnp.bfloat16)               # single cast, reused below

    slabs = []
    for _ in range(order):
        # Graph propagation step. A is shared across the folded batches, so
        # each batch is one (N_pad,N_pad)@(N_pad,D_pad) MXU matmul (f32 acc).
        if tb == 1:
            prop = jnp.dot(a, cur_bf, preferred_element_type=jnp.float32)
        else:
            prop = jnp.concatenate(
                [jnp.dot(a, cur_bf[b * n_pad:(b + 1) * n_pad, :],
                         preferred_element_type=jnp.float32)
                 for b in range(tb)], axis=0)
        cur = one_plus_eps * cur + prop             # elementwise stays f32
        cur_bf = cur.astype(jnp.bfloat16)           # one cast: next prop + head slab
        slabs.append(cur_bf)

    # Order-fused head contraction: K = order*D_pad (256 for order=2) fills the
    # v6e/v7x MXU depth in a single matmul per (b_tile, s).
    buf = slabs[0] if order == 1 else jnp.concatenate(slabs, axis=-1)
    acc_ref[...] += jnp.dot(buf, w_ref[s], preferred_element_type=jnp.float32)

    @pl.when(s == pl.num_programs(1) - 1)
    def _finalize():
        y = acc_ref[...] * scale_ref[...] + shift_ref[...]   # folded eval-mode BN
        y = jnp.maximum(y, 0.0)                              # ReLU
        out = (jnp.dot(y.astype(jnp.bfloat16), w2t_ref[...],
                       preferred_element_type=jnp.float32)
               + b2_ref[...])                                # linear2
        out_ref[...] = out.reshape(tb, n_pad, -1)


# ---------------------------------------------------------------------------
# Full forward: host-side packing/padding (cheap, once) + one pallas_call.
# ---------------------------------------------------------------------------
def ginconvfft_forward(x, supports, params, *, order):
    B, N, L, H = x.shape
    S = supports.shape[0]
    D = L * H
    K = order * S
    O = params["weight"].shape[-1]

    N_pad = _round_up(N, 128)   # lane-align A (unmasked vld, full MXU depth)
    D_pad = _round_up(D, 128)   # lane-align the contraction / x lane dim
    O_pad = _round_up(O, 128)   # lane-align the output channel dim
    TB = _pick_batch_fold(B, N_pad)
    BT = B // TB

    # x stays f32 (elementwise precision); A is bf16 (MXU operand).
    x_p = jnp.pad(x.reshape(B, N, D).astype(jnp.float32),
                  ((0, 0), (0, N_pad - N), (0, D_pad - D)))
    a_p = jnp.pad(supports.astype(jnp.float32),
                  ((0, 0), (0, N_pad - N), (0, N_pad - N))).astype(jnp.bfloat16)

    # weight (L, H*K, O): torch's stack(dim=-1)+reshape packs m = h*K + k with
    # k = s*order + o.  Re-slice per k (W_k[l*H+h, o] = weight[l, h*K+k, o]),
    # then pack the `order` slices of each support along the contraction dim so
    # the head is ONE (TB*N_pad, order*D_pad) @ (order*D_pad, O_pad) matmul.
    w = params["weight"].astype(jnp.float32).reshape(L, H, K, O)
    w = jnp.transpose(w, (2, 0, 1, 3)).reshape(K, D, O)
    w = jnp.pad(w, ((0, 0), (0, D_pad - D), (0, O_pad - O)))
    w = w.reshape(S, order * D_pad, O_pad).astype(jnp.bfloat16)

    # eval-mode BatchNorm folded into per-channel scale/shift (f32, padded).
    bn_scale = params["bn_gamma"] / jnp.sqrt(params["bn_var"] + 1e-5)
    bn_shift = params["bn_beta"] - params["bn_mean"] * bn_scale
    scale_p = jnp.pad(bn_scale, (0, O_pad - O)).reshape(1, O_pad).astype(jnp.float32)
    shift_p = jnp.pad(bn_shift, (0, O_pad - O)).reshape(1, O_pad).astype(jnp.float32)

    # linear2 (zero-padded rows/cols keep padded lanes exactly zero).
    w2t_p = jnp.pad(params["w2"].T.astype(jnp.float32),
                    ((0, O_pad - O), (0, O_pad - O))).astype(jnp.bfloat16)
    b2_p = jnp.pad(params["b2"].astype(jnp.float32),
                   (0, O_pad - O)).reshape(1, O_pad)

    eps = params["eps"].astype(jnp.float32)

    # Cost estimate: A and W are fetched exactly once (no per-batch refetch).
    flops = int(2 * B * S * order * N_pad * N_pad * D_pad       # propagation
                + 2 * B * S * N_pad * order * D_pad * O_pad     # fused head
                + 2 * B * N_pad * O_pad * O_pad)                # linear2
    bytes_accessed = int(x_p.size * 4 + a_p.size * 2 + w.size * 2
                         + B * N_pad * O_pad * 4 + w2t_p.size * 2
                         + (scale_p.size + shift_p.size + b2_p.size) * 4)

    # VMEM budget: resident A/W/W2 (worst-case double-buffered) + double-
    # buffered x/out blocks + acc scratch, clamped to 64 MiB (legal on v7x).
    # TODO(synk): when S*N_pad^2 no longer fits resident (large graphs on
    # v7x's 64 MiB VMEM), add an N row-tile grid axis + K-loop over A columns.
    vmem_need = (2 * a_p.size * 2 + 2 * w.size * 2 + 2 * w2t_p.size * 2
                 + 2 * TB * N_pad * D_pad * 4
                 + 3 * TB * N_pad * O_pad * 4
                 + 2 * (scale_p.size + shift_p.size + b2_p.size) * 4)
    vmem_limit = int(min(max(2 * vmem_need, 32 << 20), 64 << 20))

    out = pl.pallas_call(
        functools.partial(fused_gin_kernel, order=order, tb=TB, n_pad=N_pad,
                          d_pad=D_pad),
        out_shape=jax.ShapeDtypeStruct((B, N_pad, O_pad), jnp.float32),
        grid=(BT, S),
        in_specs=[
            pl.BlockSpec(memory_space=pltpu.MemorySpace.SMEM),                # eps
            pl.BlockSpec((TB, N_pad, D_pad), lambda b, s: (b, 0, 0)),         # x tile
            pl.BlockSpec((S, N_pad, N_pad), lambda b, s: (0, 0, 0)),          # A (resident)
            pl.BlockSpec((S, order * D_pad, O_pad), lambda b, s: (0, 0, 0)),  # W (resident)
            pl.BlockSpec((1, O_pad), lambda b, s: (0, 0)),                    # bn scale
            pl.BlockSpec((1, O_pad), lambda b, s: (0, 0)),                    # bn shift
            pl.BlockSpec((O_pad, O_pad), lambda b, s: (0, 0)),                # W2^T
            pl.BlockSpec((1, O_pad), lambda b, s: (0, 0)),                    # b2
        ],
        out_specs=pl.BlockSpec((TB, N_pad, O_pad), lambda b, s: (b, 0, 0)),
        scratch_shapes=[pltpu.VMEM((TB * N_pad, O_pad), jnp.float32)],
        compiler_params=pltpu.CompilerParams(
            dimension_semantics=("parallel", "arbitrary"),
            vmem_limit_bytes=vmem_limit),
        cost_estimate=pl.CostEstimate(flops=flops, transcendentals=0,
                                      bytes_accessed=bytes_accessed),
    )(eps, x_p, a_p, w, scale_p, shift_p, w2t_p, b2_p)

    return out[:, :N, :O]


# ---------------------------------------------------------------------------
# Pure-JAX reference (mirrors the PyTorch forward, eval mode), f32.
# ---------------------------------------------------------------------------
def reference_forward(x, supports, params, *, order):
    B, N, L, H = x.shape
    xf = x.reshape(B, N, L * H)
    eps = params["eps"][0]
    res = []
    for s in range(supports.shape[0]):
        A = supports[s]
        out = xf
        for _ in range(order):
            out = (1.0 + eps) * out + jnp.einsum("ij,bjd->bid", A, out)
            res.append(out)
    K = len(res)
    out = jnp.stack(res, axis=-1)                       # (B, N, L*H, K)
    out = out.reshape(B, N, L, H * K)
    out = jnp.einsum("bnlm,lmo->bno", out, params["weight"])
    C = out.shape[-1]
    y = out.reshape(B * N, C)
    y = (y - params["bn_mean"]) / jnp.sqrt(params["bn_var"] + 1e-5)
    y = y * params["bn_gamma"] + params["bn_beta"]
    y = jnp.maximum(y, 0.0)
    y = y @ params["w2"].T + params["b2"]
    return y.reshape(B, N, C)


if __name__ == "__main__":
    # module hyper-params
    B, N = 2, 16
    in_dim = 4          # L
    hidden_dim = 8      # H
    out_dim = 32        # O
    order = 2
    support_len = 2
    scale = 1.0 / (order * support_len * hidden_dim)

    key = jax.random.PRNGKey(0)
    kx, ka, kw, kw2, kb2 = jax.random.split(key, 5)

    # inputs
    x = jax.random.normal(kx, (B, N, in_dim, hidden_dim), dtype=jnp.float32)
    A_raw = jnp.abs(jax.random.normal(ka, (support_len, N, N), dtype=jnp.float32))
    supports = A_raw / jnp.sum(A_raw, axis=-1, keepdims=True)   # row-normalized

    # deterministic parameter init (shapes from __init__)
    params = {
        "weight": scale * jax.random.normal(
            kw, (in_dim, order * support_len * hidden_dim, out_dim),
            dtype=jnp.float32),
        "eps": jnp.zeros((1,), dtype=jnp.float32),
        "w2": jax.random.normal(kw2, (out_dim, out_dim), dtype=jnp.float32)
              * (1.0 / np.sqrt(out_dim)),
        "b2": jax.random.normal(kb2, (out_dim,), dtype=jnp.float32) * 0.01,
        "bn_gamma": jnp.ones((out_dim,), dtype=jnp.float32),
        "bn_beta": jnp.zeros((out_dim,), dtype=jnp.float32),
        "bn_mean": jnp.zeros((out_dim,), dtype=jnp.float32),
        "bn_var": jnp.ones((out_dim,), dtype=jnp.float32),
    }

    out = jax.block_until_ready(
        ginconvfft_forward(x, supports, params, order=order))
    ref = jax.block_until_ready(
        reference_forward(x, supports, params, order=order))

    np.testing.assert_allclose(np.asarray(out), np.asarray(ref),
                               rtol=2e-2, atol=2e-2)
    assert out.shape == (B, N, out_dim)
    print("KERNEL_OK")
</pallas_src>

<mosaic_0001>
module attributes {stable_mosaic.version = 11 : i64} {
  func.func @fused_gin_kernel(%arg0: i32, %arg1: i32, %arg2: memref<1xf32, #tpu.memory_space<smem>>, %arg3: memref<1x128x128xf32, #tpu.memory_space<vmem>>, %arg4: memref<2x128x128xbf16, #tpu.memory_space<vmem>>, %arg5: memref<2x256x128xbf16, #tpu.memory_space<vmem>>, %arg6: memref<1x128xf32, #tpu.memory_space<vmem>>, %arg7: memref<1x128xf32, #tpu.memory_space<vmem>>, %arg8: memref<128x128xbf16, #tpu.memory_space<vmem>>, %arg9: memref<1x128xf32, #tpu.memory_space<vmem>>, %arg10: memref<1x128x128xf32, #tpu.memory_space<vmem>>, %arg11: memref<128x128xf32, #tpu.memory_space<vmem>>) attributes {dimension_semantics = [#tpu.dimension_semantics<parallel>, #tpu.dimension_semantics<arbitrary>], iteration_bounds = array<i64: 2, 2>, scalar_prefetch = 0 : i64, scratch_operands = 1 : i64, tpu.core_type = #tpu.core_type<tc>, window_params = [{transform_indices = @transform_0, window_bounds = array<i64: 1>}, {transform_indices = @transform_1, window_bounds = array<i64: 1, 128, 128>}, {pipeline_mode = #tpu.pipeline_mode<synchronous>, transform_indices = @transform_2, window_bounds = array<i64: 2, 128, 128>}, {pipeline_mode = #tpu.pipeline_mode<synchronous>, transform_indices = @transform_3, window_bounds = array<i64: 2, 256, 128>}, {pipeline_mode = #tpu.pipeline_mode<synchronous>, transform_indices = @transform_4, window_bounds = array<i64: 1, 128>}, {pipeline_mode = #tpu.pipeline_mode<synchronous>, transform_indices = @transform_5, window_bounds = array<i64: 1, 128>}, {pipeline_mode = #tpu.pipeline_mode<synchronous>, transform_indices = @transform_6, window_bounds = array<i64: 128, 128>}, {pipeline_mode = #tpu.pipeline_mode<synchronous>, transform_indices = @transform_7, window_bounds = array<i64: 1, 128>}, {transform_indices = @transform_8, window_bounds = array<i64: 1, 128, 128>}]} {
    %c0_i32 = arith.constant 0 : i32
    %0 = arith.cmpi eq, %arg1, %c0_i32 : i32
    %1 = arith.extui %0 : i1 to i32
    %c0_i32_0 = arith.constant 0 : i32
    %2 = arith.cmpi ne, %1, %c0_i32_0 : i32
    scf.if %2 {
      %cst_16 = arith.constant 0.000000e+00 : f32
      %32 = vector.broadcast %cst_16 : f32 to vector<128x128xf32>
      %c0_17 = arith.constant 0 : index
      %c0_18 = arith.constant 0 : index
      %33 = vector.load %arg11[%c0_17, %c0_18] : memref<128x128xf32, #tpu.memory_space<vmem>>, vector<128x128xf32>
      tpu.vector_store %arg11[%c0_17, %c0_18], %32 {strides = array<i32>} : memref<128x128xf32, #tpu.memory_space<vmem>>, vector<128x128xf32>,
    } else {
    }
    %c0 = arith.constant 0 : index
    %3 = memref.load %arg2[%c0] : memref<1xf32, #tpu.memory_space<smem>>
    %cst = arith.constant 1.000000e+00 : f32
    %4 = arith.addf %cst, %3 : f32
    %5 = arith.index_cast %arg1 : i32 to index
    %c0_1 = arith.constant 0 : index
    %c0_2 = arith.constant 0 : index
    %6 = vector.load %arg4[%5, %c0_1, %c0_2] : memref<2x128x128xbf16, #tpu.memory_space<vmem>>, vector<1x128x128xbf16>
    %7 = vector.shape_cast %6 : vector<1x128x128xbf16> to vector<128x128xbf16>
    %c0_3 = arith.constant 0 : index
    %c0_4 = arith.constant 0 : index
    %c0_5 = arith.constant 0 : index
    %8 = vector.load %arg3[%c0_3, %c0_4, %c0_5] : memref<1x128x128xf32, #tpu.memory_space<vmem>>, vector<1x128x128xf32>
    %9 = vector.shape_cast %8 : vector<1x128x128xf32> to vector<128x128xf32>
    %10 = arith.truncf %9 : vector<128x128xf32> to vector<128x128xbf16>
    %cst_6 = arith.constant dense<0.000000e+00> : vector<128x128xf32>
    %11 = tpu.matmul %7, %10, %cst_6 {dimension_numbers = #tpu.dot_dimension_numbers<[1], [0], [0], [1], [0, 0, 1, 1], [], []>} : vector<128x128xbf16>, vector<128x128xbf16>, vector<128x128xf32> -> vector<128x128xf32>
    %12 = vector.broadcast %4 : f32 to vector<128x128xf32>
    %13 = arith.mulf %12, %9 : vector<128x128xf32>
    %14 = arith.addf %13, %11 : vector<128x128xf32>
    %15 = arith.truncf %14 : vector<128x128xf32> to vector<128x128xbf16>
    %cst_7 = arith.constant dense<0.000000e+00> : vector<128x128xf32>
    %16 = tpu.matmul %7, %15, %cst_7 {dimension_numbers = #tpu.dot_dimension_numbers<[1], [0], [0], [1], [0, 0, 1, 1], [], []>} : vector<128x128xbf16>, vector<128x128xbf16>, vector<128x128xf32> -> vector<128x128xf32>
    %17 = vector.broadcast %4 : f32 to vector<128x128xf32>
    %18 = arith.mulf %17, %14 : vector<128x128xf32>
    %19 = arith.addf %18, %16 : vector<128x128xf32>
    %20 = arith.truncf %19 : vector<128x128xf32> to vector<128x128xbf16>
    %21 = tpu.concatenate %15, %20 in 1 : vector<128x128xbf16>, vector<128x128xbf16> -> vector<128x256xbf16>
    %c0_8 = arith.constant 0 : index
    %c0_9 = arith.constant 0 : index
    %22 = vector.load %arg11[%c0_8, %c0_9] : memref<128x128xf32, #tpu.memory_space<vmem>>, vector<128x128xf32>
    %23 = arith.index_cast %arg1 : i32 to index
    %c0_10 = arith.constant 0 : index
    %c0_11 = arith.constant 0 : index
    %24 = vector.load %arg5[%23, %c0_10, %c0_11] : memref<2x256x128xbf16, #tpu.memory_space<vmem>>, vector<1x256x128xbf16>
    %25 = vector.shape_cast %24 : vector<1x256x128xbf16> to vector<256x128xbf16>
    %cst_12 = arith.constant dense<0.000000e+00> : vector<128x128xf32>
    %26 = tpu.matmul %21, %25, %cst_12 {dimension_numbers = #tpu.dot_dimension_numbers<[1], [0], [0], [1], [0, 0, 1, 1], [], []>} : vector<128x256xbf16>, vector<256x128xbf16>, vector<128x128xf32> -> vector<128x128xf32>
    %27 = arith.addf %22, %26 : vector<128x128xf32>
    %c0_13 = arith.constant 0 : index
    %c0_14 = arith.constant 0 : index
    %28 = vector.load %arg11[%c0_13, %c0_14] : memref<128x128xf32, #tpu.memory_space<vmem>>, vector<128x128xf32>
    tpu.vector_store %arg11[%c0_13, %c0_14], %27 {strides = array<i32>} : memref<128x128xf32, #tpu.memory_space<vmem>>, vector<128x128xf32>,
    %c1_i32 = arith.constant 1 : i32
    %29 = arith.cmpi eq, %arg1, %c1_i32 : i32
    %30 = arith.extui %29 : i1 to i32
    %c0_i32_15 = arith.constant 0 : i32
    %31 = arith.cmpi ne, %30, %c0_i32_15 : i32
    scf.if %31 {
      %c0_16 = arith.constant 0 : index
      %c0_17 = arith.constant 0 : index
      %32 = vector.load %arg11[%c0_16, %c0_17] : memref<128x128xf32, #tpu.memory_space<vmem>>, vector<128x128xf32>
      %c0_18 = arith.constant 0 : index
      %c0_19 = arith.constant 0 : index
      %33 = vector.load %arg6[%c0_18, %c0_19] : memref<1x128xf32, #tpu.memory_space<vmem>>, vector<1x128xf32>
      %34 = vector.broadcast %33 : vector<1x128xf32> to vector<128x128xf32>
      %35 = arith.mulf %32, %34 : vector<128x128xf32>
      %c0_20 = arith.constant 0 : index
      %c0_21 = arith.constant 0 : index
      %36 = vector.load %arg7[%c0_20, %c0_21] : memref<1x128xf32, #tpu.memory_space<vmem>>, vector<1x128xf32>
      %37 = vector.broadcast %36 : vector<1x128xf32> to vector<128x128xf32>
      %38 = arith.addf %35, %37 : vector<128x128xf32>
      %cst_22 = arith.constant 0.000000e+00 : f32
      %39 = vector.broadcast %cst_22 : f32 to vector<128x128xf32>
      %40 = arith.maximumf %38, %39 : vector<128x128xf32>
      %41 = arith.truncf %40 : vector<128x128xf32> to vector<128x128xbf16>
      %c0_23 = arith.constant 0 : index
      %c0_24 = arith.constant 0 : index
      %42 = vector.load %arg8[%c0_23, %c0_24] : memref<128x128xbf16, #tpu.memory_space<vmem>>, vector<128x128xbf16>
      %cst_25 = arith.constant dense<0.000000e+00> : vector<128x128xf32>
      %43 = tpu.matmul %41, %42, %cst_25 {dimension_numbers = #tpu.dot_dimension_numbers<[1], [0], [0], [1], [0, 0, 1, 1], [], []>} : vector<128x128xbf16>, vector<128x128xbf16>, vector<128x128xf32> -> vector<128x128xf32>
      %c0_26 = arith.constant 0 : index
      %c0_27 = arith.constant 0 : index
      %44 = vector.load %arg9[%c0_26, %c0_27] : memref<1x128xf32, #tpu.memory_space<vmem>>, vector<1x128xf32>
      %45 = vector.broadcast %44 : vector<1x128xf32> to vector<128x128xf32>
      %46 = arith.addf %43, %45 : vector<128x128xf32>
      %47 = vector.shape_cast %46 : vector<128x128xf32> to vector<1x128x128xf32>
      %c0_28 = arith.constant 0 : index
      %c0_29 = arith.constant 0 : index
      %c0_30 = arith.constant 0 : index
      %48 = vector.load %arg10[%c0_28, %c0_29, %c0_30] : memref<1x128x128xf32, #tpu.memory_space<vmem>>, vector<1x128x128xf32>
      tpu.vector_store %arg10[%c0_28, %c0_29, %c0_30], %47 {strides = array<i32>} : memref<1x128x128xf32, #tpu.memory_space<vmem>>, vector<1x128x128xf32>,
    } else {
    }
    return
  }
  func.func @transform_0(%arg0: i32, %arg1: i32) -> i32 {
    %c0_i32 = arith.constant 0 : i32
    %c0_i32_0 = arith.constant 0 : i32
    return %c0_i32 : i32
  }
  func.func @transform_1(%arg0: i32, %arg1: i32) -> (i32, i32, i32) {
    %c0_i32 = arith.constant 0 : i32
    %c0_i32_0 = arith.constant 0 : i32
    %c0_i32_1 = arith.constant 0 : i32
    return %arg0, %c0_i32, %c0_i32_0 : i32, i32, i32
  }
  func.func @transform_2(%arg0: i32, %arg1: i32) -> (i32, i32, i32) {
    %c0_i32 = arith.constant 0 : i32
    %c0_i32_0 = arith.constant 0 : i32
    %c0_i32_1 = arith.constant 0 : i32
    %c0_i32_2 = arith.constant 0 : i32
    return %c0_i32, %c0_i32_0, %c0_i32_1 : i32, i32, i32
  }
  func.func @transform_3(%arg0: i32, %arg1: i32) -> (i32, i32, i32) {
    %c0_i32 = arith.constant 0 : i32
    %c0_i32_0 = arith.constant 0 : i32
    %c0_i32_1 = arith.constant 0 : i32
    %c0_i32_2 = arith.constant 0 : i32
    return %c0_i32, %c0_i32_0, %c0_i32_1 : i32, i32, i32
  }
  func.func @transform_4(%arg0: i32, %arg1: i32) -> (i32, i32) {
    %c0_i32 = arith.constant 0 : i32
    %c0_i32_0 = arith.constant 0 : i32
    %c0_i32_1 = arith.constant 0 : i32
    return %c0_i32, %c0_i32_0 : i32, i32
  }
  func.func @transform_5(%arg0: i32, %arg1: i32) -> (i32, i32) {
    %c0_i32 = arith.constant 0 : i32
    %c0_i32_0 = arith.constant 0 : i32
    %c0_i32_1 = arith.constant 0 : i32
    return %c0_i32, %c0_i32_0 : i32, i32
  }
  func.func @transform_6(%arg0: i32, %arg1: i32) -> (i32, i32) {
    %c0_i32 = arith.constant 0 : i32
    %c0_i32_0 = arith.constant 0 : i32
    %c0_i32_1 = arith.constant 0 : i32
    return %c0_i32, %c0_i32_0 : i32, i32
  }
  func.func @transform_7(%arg0: i32, %arg1: i32) -> (i32, i32) {
    %c0_i32 = arith.constant 0 : i32
    %c0_i32_0 = arith.constant 0 : i32
    %c0_i32_1 = arith.constant 0 : i32
    return %c0_i32, %c0_i32_0 : i32, i32
  }
  func.func @transform_8(%arg0: i32, %arg1: i32) -> (i32, i32, i32) {
    %c0_i32 = arith.constant 0 : i32
    %c0_i32_0 = arith.constant 0 : i32
    %c0_i32_1 = arith.constant 0 : i32
    return %arg0, %c0_i32, %c0_i32_0 : i32, i32, i32
  }
}

</mosaic_0001>

<llo_original>
// kernel: tpu_custom_call.1
$region0: #{tpu_custom_call.1}
  #allocation0 [shape = 'u32[]', space=smem, size = 0x4, offset = 0x4, fixed_abs, tag = 'smem constant byte address 0x4 - core index']
  #allocation1 [shape = 'u32[144,128]{1,0:T(1,128)}', space=vmem, size = 0x12000, scoped, tag = 'internal scratch']
  #allocation2 [shape = 'f32[128,128]{1,0:T(8,128)}', space=vmem, size = 0x10000, scoped, tag = 'scratch operand']
  #allocation3 [shape = 'f32[1]{0:T(128)S(6)}', space=smem, size = 0x200, scoped, tag = 'scoped memory for tpu_custom_call.1']
  %s0 = inlined_call_operand.<no memory space> [shape: f32[1], index: 0, kind: input, shape index: {}]
  %s1 = inlined_call_operand.hbm [shape: f32[2,128,128], index: 1, kind: input, shape index: {}]
  %s2 = inlined_call_operand.hbm [shape: bf16[2,128,128], index: 2, kind: input, shape index: {}]
  %s3 = inlined_call_operand.hbm [shape: bf16[2,256,128], index: 3, kind: input, shape index: {}]
  %s4 = inlined_call_operand.vmem [shape: f32[1,128], index: 4, kind: input, shape index: {}]
  %s5 = inlined_call_operand.vmem [shape: f32[1,128], index: 5, kind: input, shape index: {}]
  %s6 = inlined_call_operand.hbm [shape: bf16[128,128], index: 6, kind: input, shape index: {}]
  %s7 = inlined_call_operand.vmem [shape: f32[1,128], index: 7, kind: input, shape index: {}]
  %s8 = inlined_call_operand.hbm [shape: f32[2,128,128], index: 8, kind: output, shape index: {}]
  %s9 = sld [smem:[#allocation0]]
  $region89: #{tpu_custom_call.1} parent=0
    _
  %s11 = ssub.s32 1, %s9
  %s12 = scalar_select 0, %s11, %s9
  %13 = sst [smem:[#allocation3]] %s0
  $region1: #{tpu_custom_call.1} parent=0
    #allocation4 [shape = 'u8[131072]{0}', space=vmem, size = 0x20000, scoped, tag = 'input window, operand 1']
    #allocation5 [shape = 's32[2]{0}', space=sflag, size = 0x8, scoped, tag = 'scoped memory for tpu_custom_call.1']
    #allocation6 [shape = 's32[2]{0}', space=sflag, size = 0x8, scoped, tag = 'scoped memory for tpu_custom_call.1']
    #allocation7 [shape = 'u8[65536]{0}', space=vmem, size = 0x10000, scoped, tag = 'input window, operand 2, single buffered']
    #allocation8 [shape = 's32[1]{0}', space=sflag, size = 0x4, scoped, tag = 'scoped memory for tpu_custom_call.1']
    #allocation9 [shape = 'u8[131072]{0}', space=vmem, size = 0x20000, scoped, tag = 'input window, operand 3, single buffered']
    #allocation10 [shape = 'u8[32768]{0}', space=vmem, size = 0x8000, scoped, tag = 'input window, operand 6, single buffered']
    #allocation11 [shape = 's32[1]{0}', space=sflag, size = 0x4, scoped, tag = 'scoped memory for tpu_custom_call.1']
    #allocation12 [shape = 'u8[131072]{0}', space=vmem, size = 0x20000, scoped, tag = 'output window, operand 0']
    %14 = vsyncpa [#allocation5], 0
    %s15 = scalar_lea.sflag [#allocation5], 1
    %16 = vsyncpa %s15, 0
    %17 = vsyncpa [#allocation8], 0
    %18 = vsyncpa [#allocation11], 0
    %19 = vsyncpa [#allocation6], 0
    %s20 = scalar_lea.sflag [#allocation6], 1
    %21 = vsyncpa %s20, 0
    loop: start=0, step=1, limit=6
    $region2: #{tpu_custom_call.1} parent=1 // loop_pre_header
      _
    $region3: #{tpu_custom_call.1} parent=1 // loop_header
      %s23 = sphi 0, %s27
      %p24 = scmp.ge.s32.totalorder %s23, 6
      %s30 = sphi 0, %s42
      %s31 = sphi 0, %s38
      %s32 = sphi 0, %s30
      %s33 = sphi 0, %s31
      %s34 = sphi 0, %s32
      %s35 = sphi 0, %s33
      %s43 = sphi 0, %s43
      %s45 = sphi 0, %s43
      %s46 = sphi 0, %s45
      %s60 = sphi 0, %s46
      %s66 = sphi 0, %s68
      %s69 = sphi 0, %s66
      %s70 = sphi 0, %s69
      %s86 = sphi 0, %s70
      %s90 = sphi 0, %s90
      %s92 = sphi 0, %s90
      %s93 = sphi 0, %s92
      %s107 = sphi 0, %s93
      %s111 = sphi 0, %s111
      %s113 = sphi 0, %s111
      %s114 = sphi 0, %s113
      %s128 = sphi 0, %s114
      %s132 = sphi 0, %s132
      %s134 = sphi 0, %s132
      %s135 = sphi 0, %s134
      %s149 = sphi 0, %s135
      %s153 = sphi 0, %s153
      %s155 = sphi 0, %s153
      %s156 = sphi 0, %s155
      %s170 = sphi 0, %s156
      %s174 = sphi 0, %s174
      %s176 = sphi 0, %s174
      %s177 = sphi 0, %s176
      %s191 = sphi 0, %s177
      %s195 = sphi 0, %s195
      %s197 = sphi 0, %s195
      %s198 = sphi 0, %s197
      %s212 = sphi 0, %s198
      %s218 = sphi 0, %s220
      %s221 = sphi 0, %s218
      %s222 = sphi 0, %s221
      %s238 = sphi 0, %s222
    $region4: #{tpu_custom_call.1} parent=1 // loop_header_branch
      %26 = sbr.rel (%p24) target = $region8
    $region5: #{tpu_custom_call.1} parent=1 // loop_body
      %s28 = ssub.s32 %s23, 1
      %s29 = ssub.s32 %s23, 2
      %s36 = sadd.s32 1, %s31
      %p37 = scmp.ge.s32.totalorder %s36, 2
      %s38 = scalar_select %p37, 0, %s36
      %s39 = sadd.s32 1, %s30
      %s40 = scalar_select %p37, %s39, %s30
      %p41 = scmp.ge.s32.totalorder %s40, 2
      %s42 = scalar_select %p41, 0, %s40
      %s44 = sadd.s32 %s43, 1
      %p47 = scmp.eq.s32.totalorder %s23, 3
      %p48 = scmp.ne.s32.totalorder %s43, %s45
      %p49 = scmp.eq.s32.totalorder %s23, 0
      %p50 = por %p48, %p49
      %p51 = scmp.ne.s32.totalorder %s43, %s45
      %p52 = scmp.eq.s32.totalorder %s28, 3
      %p53 = por %p51, %p52
      %p54 = scmp.ne.s32.totalorder %s45, %s46
      %p55 = scmp.eq.s32.totalorder %s28, 0
      %p56 = por %p54, %p55
      %p57 = scmp.ne.s32.totalorder %s45, %s46
      %p58 = scmp.eq.s32.totalorder %s29, 3
      %p59 = por %p57, %p58
      %p61 = scmp.ne.s32.totalorder %s46, %s60
      %p62 = scmp.eq.s32.totalorder %s29, 0
      %p63 = por %p61, %p62
      %s64 = ssub.s32 %s30, %s42
      %p65 = scmp.eq.s32.totalorder %s64, 0
      %s67 = sadd.s32 %s66, 1
      %s68 = scalar_select %p65, %s66, %s67
      %p71 = pneg %p65
      %p72 = scmp.eq.s32.totalorder %s23, 3
      %p73 = por %p71, %p72
      %p74 = scmp.ne.s32.totalorder %s66, %s69
      %p75 = scmp.eq.s32.totalorder %s23, 0
      %p76 = por %p74, %p75
      %p77 = scmp.ne.s32.totalorder %s66, %s69
      %p78 = scmp.eq.s32.totalorder %s28, 3
      %p79 = por %p77, %p78
      %p80 = scmp.ne.s32.totalorder %s69, %s70
      %p81 = scmp.eq.s32.totalorder %s28, 0
      %p82 = por %p80, %p81
      %p83 = scmp.ne.s32.totalorder %s69, %s70
      %p84 = scmp.eq.s32.totalorder %s29, 3
      %p85 = por %p83, %p84
      %p87 = scmp.ne.s32.totalorder %s70, %s86
      %p88 = scmp.eq.s32.totalorder %s29, 0
      %p89 = por %p87, %p88
      %s91 = sadd.s32 %s90, 1
      %p94 = scmp.eq.s32.totalorder %s23, 3
      %p95 = scmp.ne.s32.totalorder %s90, %s92
      %p96 = scmp.eq.s32.totalorder %s23, 0
      %p97 = por %p95, %p96
      %p98 = scmp.ne.s32.totalorder %s90, %s92
      %p99 = scmp.eq.s32.totalorder %s28, 3
      %p100 = por %p98, %p99
      %p101 = scmp.ne.s32.totalorder %s92, %s93
      %p102 = scmp.eq.s32.totalorder %s28, 0
      %p103 = por %p101, %p102
      %p104 = scmp.ne.s32.totalorder %s92, %s93
      %p105 = scmp.eq.s32.totalorder %s29, 3
      %p106 = por %p104, %p105
      %p108 = scmp.ne.s32.totalorder %s93, %s107
      %p109 = scmp.eq.s32.totalorder %s29, 0
      %p110 = por %p108, %p109
      %s112 = sadd.s32 %s111, 1
      %p115 = scmp.eq.s32.totalorder %s23, 3
      %p116 = scmp.ne.s32.totalorder %s111, %s113
      %p117 = scmp.eq.s32.totalorder %s23, 0
      %p118 = por %p116, %p117
      %p119 = scmp.ne.s32.totalorder %s111, %s113
      %p120 = scmp.eq.s32.totalorder %s28, 3
      %p121 = por %p119, %p120
      %p122 = scmp.ne.s32.totalorder %s113, %s114
      %p123 = scmp.eq.s32.totalorder %s28, 0
      %p124 = por %p122, %p123
      %p125 = scmp.ne.s32.totalorder %s113, %s114
      %p126 = scmp.eq.s32.totalorder %s29, 3
      %p127 = por %p125, %p126
      %p129 = scmp.ne.s32.totalorder %s114, %s128
      %p130 = scmp.eq.s32.totalorder %s29, 0
      %p131 = por %p129, %p130
      %s133 = sadd.s32 %s132, 1
      %p136 = scmp.eq.s32.totalorder %s23, 3
      %p137 = scmp.ne.s32.totalorder %s132, %s134
      %p138 = scmp.eq.s32.totalorder %s23, 0
      %p139 = por %p137, %p138
      %p140 = scmp.ne.s32.totalorder %s132, %s134
      %p141 = scmp.eq.s32.totalorder %s28, 3
      %p142 = por %p140, %p141
      %p143 = scmp.ne.s32.totalorder %s134, %s135
      %p144 = scmp.eq.s32.totalorder %s28, 0
      %p145 = por %p143, %p144
      %p146 = scmp.ne.s32.totalorder %s134, %s135
      %p147 = scmp.eq.s32.totalorder %s29, 3
      %p148 = por %p146, %p147
      %p150 = scmp.ne.s32.totalorder %s135, %s149
      %p151 = scmp.eq.s32.totalorder %s29, 0
      %p152 = por %p150, %p151
      %s154 = sadd.s32 %s153, 1
      %p157 = scmp.eq.s32.totalorder %s23, 3
      %p158 = scmp.ne.s32.totalorder %s153, %s155
      %p159 = scmp.eq.s32.totalorder %s23, 0
      %p160 = por %p158, %p159
      %p161 = scmp.ne.s32.totalorder %s153, %s155
      %p162 = scmp.eq.s32.totalorder %s28, 3
      %p163 = por %p161, %p162
      %p164 = scmp.ne.s32.totalorder %s155, %s156
      %p165 = scmp.eq.s32.totalorder %s28, 0
      %p166 = por %p164, %p165
      %p167 = scmp.ne.s32.totalorder %s155, %s156
      %p168 = scmp.eq.s32.totalorder %s29, 3
      %p169 = por %p167, %p168
      %p171 = scmp.ne.s32.totalorder %s156, %s170
      %p172 = scmp.eq.s32.totalorder %s29, 0
      %p173 = por %p171, %p172
      %s175 = sadd.s32 %s174, 1
      %p178 = scmp.eq.s32.totalorder %s23, 3
      %p179 = scmp.ne.s32.totalorder %s174, %s176
      %p180 = scmp.eq.s32.totalorder %s23, 0
      %p181 = por %p179, %p180
      %p182 = scmp.ne.s32.totalorder %s174, %s176
      %p183 = scmp.eq.s32.totalorder %s28, 3
      %p184 = por %p182, %p183
      %p185 = scmp.ne.s32.totalorder %s176, %s177
      %p186 = scmp.eq.s32.totalorder %s28, 0
      %p187 = por %p185, %p186
      %p188 = scmp.ne.s32.totalorder %s176, %s177
      %p189 = scmp.eq.s32.totalorder %s29, 3
      %p190 = por %p188, %p189
      %p192 = scmp.ne.s32.totalorder %s177, %s191
      %p193 = scmp.eq.s32.totalorder %s29, 0
      %p194 = por %p192, %p193
      %s196 = sadd.s32 %s195, 1
      %p199 = scmp.eq.s32.totalorder %s23, 3
      %p200 = scmp.ne.s32.totalorder %s195, %s197
      %p201 = scmp.eq.s32.totalorder %s23, 0
      %p202 = por %p200, %p201
      %p203 = scmp.ne.s32.totalorder %s195, %s197
      %p204 = scmp.eq.s32.totalorder %s28, 3
      %p205 = por %p203, %p204
      %p206 = scmp.ne.s32.totalorder %s197, %s198
      %p207 = scmp.eq.s32.totalorder %s28, 0
      %p208 = por %p206, %p207
      %p209 = scmp.ne.s32.totalorder %s197, %s198
      %p210 = scmp.eq.s32.totalorder %s29, 3
      %p211 = por %p209, %p210
      %p213 = scmp.ne.s32.totalorder %s198, %s212
      %p214 = scmp.eq.s32.totalorder %s29, 0
      %p215 = por %p213, %p214
      %s216 = ssub.s32 %s30, %s42
      %p217 = scmp.eq.s32.totalorder %s216, 0
      %s219 = sadd.s32 %s218, 1
      %s220 = scalar_select %p217, %s218, %s219
      %p223 = pneg %p217
      %p224 = scmp.eq.s32.totalorder %s23, 3
      %p225 = por %p223, %p224
      %p226 = scmp.ne.s32.totalorder %s218, %s221
      %p227 = scmp.eq.s32.totalorder %s23, 0
      %p228 = por %p226, %p227
      %p229 = scmp.ne.s32.totalorder %s218, %s221
      %p230 = scmp.eq.s32.totalorder %s28, 3
      %p231 = por %p229, %p230
      %p232 = scmp.ne.s32.totalorder %s221, %s222
      %p233 = scmp.eq.s32.totalorder %s28, 0
      %p234 = por %p232, %p233
      %p235 = scmp.ne.s32.totalorder %s221, %s222
      %p236 = scmp.eq.s32.totalorder %s29, 3
      %p237 = por %p235, %p236
      %p239 = scmp.ne.s32.totalorder %s222, %s238
      %p240 = scmp.eq.s32.totalorder %s29, 0
      %p241 = por %p239, %p240
      %p242 = scmp.le.s32.totalorder 1, %s23
      %p243 = scmp.lt.s32.totalorder %s23, 5
      %p244 = pnand %p242, %p243
      %p245 = pneg %p244
      // Predicated region
      $region9: #{tpu_custom_call.1} parent=5 // pred_check
        _
      $region10: #{tpu_custom_call.1} parent=5 // pred_check_branch
        %247 = sbr.rel (%p244) target = $region12
      $region11: #{tpu_custom_call.1} parent=5 // pred_region
        %s248 = ssub.s32 %s23, 1
        // Predicated region
        $region13: #{tpu_custom_call.1} parent=11 // pred_check
          %p249 = pneg %p56
        $region14: #{tpu_custom_call.1} parent=11 // pred_check_branch
          %251 = sbr.rel (%p249) target = $region16
        $region15: #{tpu_custom_call.1} parent=11 // pred_region
          _
        $region16: #{tpu_custom_call.1} parent=11 // pred_fallthru
          _
        // Predicated region
        $region17: #{tpu_custom_call.1} parent=11 // pred_check
          %p252 = pneg %p103
        $region18: #{tpu_custom_call.1} parent=11 // pred_check_branch
          %254 = sbr.rel (%p252) target = $region20
        $region19: #{tpu_custom_call.1} parent=11 // pred_region
          %s256 = ssub.s32 2048, 2048
          %257 = vsyncadd [#allocation8], %s256
          %s258 = sshll.u32 [#allocation7], 4
          %s259 = int_to_ptr.vmem [resolvable:$true] %s258
          %264 = dma.hbm_to_vmem [thread:$0]  %s2, 2048, %s259, [#allocation8], 64, 64, 4
        $region20: #{tpu_custom_call.1} parent=11 // pred_fallthru
          _
        // Predicated region
        $region21: #{tpu_custom_call.1} parent=11 // pred_check
          %p265 = pneg %p124
        $region22: #{tpu_custom_call.1} parent=11 // pred_check_branch
          %267 = sbr.rel (%p265) target = $region24
        $region23: #{tpu_custom_call.1} parent=11 // pred_region
          %s269 = ssub.s32 4096, 4096
          %270 = vsyncadd [#allocation8], %s269
          %s271 = sshll.u32 [#allocation9], 4
          %s272 = int_to_ptr.vmem [resolvable:$true] %s271
          %277 = dma.hbm_to_vmem [thread:$0]  %s3, 4096, %s272, [#allocation8], 64, 64, 4
        $region24: #{tpu_custom_call.1} parent=11 // pred_fallthru
          _
        // Predicated region
        $region25: #{tpu_custom_call.1} parent=11 // pred_check
          %p278 = pneg %p145
        $region26: #{tpu_custom_call.1} parent=11 // pred_check_branch
          %280 = sbr.rel (%p278) target = $region28
        $region27: #{tpu_custom_call.1} parent=11 // pred_region
          _
        $region28: #{tpu_custom_call.1} parent=11 // pred_fallthru
          _
        // Predicated region
        $region29: #{tpu_custom_call.1} parent=11 // pred_check
          %p281 = pneg %p166
        $region30: #{tpu_custom_call.1} parent=11 // pred_check_branch
          %283 = sbr.rel (%p281) target = $region32
        $region31: #{tpu_custom_call.1} parent=11 // pred_region
          _
        $region32: #{tpu_custom_call.1} parent=11 // pred_fallthru
          _
        // Predicated region
        $region33: #{tpu_custom_call.1} parent=11 // pred_check
          %p284 = pneg %p187
        $region34: #{tpu_custom_call.1} parent=11 // pred_check_branch
          %286 = sbr.rel (%p284) target = $region36
        $region35: #{tpu_custom_call.1} parent=11 // pred_region
          %s288 = ssub.s32 1024, 1024
          %289 = vsyncadd [#allocation11], %s288
          %s290 = sshll.u32 [#allocation10], 4
          %s291 = int_to_ptr.vmem [resolvable:$true] %s290
          %296 = dma.hbm_to_vmem [thread:$0]  %s6, 1024, %s291, [#allocation11], 64, 64, 4
        $region36: #{tpu_custom_call.1} parent=11 // pred_fallthru
          _
        // Predicated region
        $region37: #{tpu_custom_call.1} parent=11 // pred_check
          %p297 = pneg %p208
        $region38: #{tpu_custom_call.1} parent=11 // pred_check_branch
          %299 = sbr.rel (%p297) target = $region40
        $region39: #{tpu_custom_call.1} parent=11 // pred_region
          _
        $region40: #{tpu_custom_call.1} parent=11 // pred_fallthru
          _
      $region12: #{tpu_custom_call.1} parent=5 // pred_fallthru
        _
      %p300 = scmp.lt.s32.totalorder %s23, 4
      // Predicated region
      $region41: #{tpu_custom_call.1} parent=5 // pred_check
        %p301 = pneg %p300
      $region42: #{tpu_custom_call.1} parent=5 // pred_check_branch
        %303 = sbr.rel (%p301) target = $region44
      $region43: #{tpu_custom_call.1} parent=5 // pred_region
        // Predicated region
        $region45: #{tpu_custom_call.1} parent=43 // pred_check
          %p304 = pneg %p76
        $region46: #{tpu_custom_call.1} parent=43 // pred_check_branch
          %306 = sbr.rel (%p304) target = $region48
        $region47: #{tpu_custom_call.1} parent=43 // pred_region
          %s307 = sand.u32 %s66, 1
          %s308 = scalar_lea.sflag [#allocation5], %s307
          %s309 = sand.u32 %s66, 1
          %s310 = smul.addr %s309, 128
          %s311 = scalar_lea.vmem [#allocation4], %s310
          %s313 = ssub.s32 2048, 2048
          %314 = vsyncadd %s308, %s313
          %s315 = smul.addr %s30, 16
          %s316 = smul.addr %s315, 128
          %s317 = scalar_lea.hbm %s1, %s316
          %s318 = sshll.u32 %s311, 4
          %s319 = int_to_ptr.vmem [resolvable:$true] %s318
          %324 = dma.hbm_to_vmem [thread:$0]  %s317, 2048, %s319, %s308, 128, 128, 8
        $region48: #{tpu_custom_call.1} parent=43 // pred_fallthru
          _
      $region44: #{tpu_custom_call.1} parent=5 // pred_fallthru
        _
      %p325 = scmp.le.s32.totalorder 1, %s23
      %p326 = scmp.lt.s32.totalorder %s23, 5
      %p327 = pnand %p325, %p326
      %p328 = pneg %p327
      // Predicated region
      $region49: #{tpu_custom_call.1} parent=5 // pred_check
        _
      $region50: #{tpu_custom_call.1} parent=5 // pred_check_branch
        %330 = sbr.rel (%p327) target = $region52
      $region51: #{tpu_custom_call.1} parent=5 // pred_region
        %s331 = ssub.s32 %s23, 1
        %s332 = sand.u32 %s69, 1
        %s333 = scalar_lea.sflag [#allocation5], %s332
        %s334 = sand.u32 %s69, 1
        %s335 = smul.addr %s334, 128
        %s336 = scalar_lea.vmem [#allocation4], %s335
        // Predicated region
        $region53: #{tpu_custom_call.1} parent=51 // pred_check
          %p337 = pneg %p82
        $region54: #{tpu_custom_call.1} parent=51 // pred_check_branch
          %339 = sbr.rel (%p337) target = $region56
        $region55: #{tpu_custom_call.1} parent=51 // pred_region
          %340 = dma.done %s333, 2048
        $region56: #{tpu_custom_call.1} parent=51 // pred_fallthru
          _
        // Predicated region
        $region57: #{tpu_custom_call.1} parent=51 // pred_check
          %p341 = pneg %p103
        $region58: #{tpu_custom_call.1} parent=51 // pred_check_branch
          %343 = sbr.rel (%p341) target = $region60
        $region59: #{tpu_custom_call.1} parent=51 // pred_region
          %344 = dma.done [#allocation8], 2048
        $region60: #{tpu_custom_call.1} parent=51 // pred_fallthru
          _
        // Predicated region
        $region61: #{tpu_custom_call.1} parent=51 // pred_check
          %p345 = pneg %p124
        $region62: #{tpu_custom_call.1} parent=51 // pred_check_branch
          %347 = sbr.rel (%p345) target = $region64
        $region63: #{tpu_custom_call.1} parent=51 // pred_region
          %348 = dma.done [#allocation8], 4096
        $region64: #{tpu_custom_call.1} parent=51 // pred_fallthru
          _
        // Predicated region
        $region65: #{tpu_custom_call.1} parent=51 // pred_check
          %p349 = pneg %p187
        $region66: #{tpu_custom_call.1} parent=51 // pred_check_branch
          %351 = sbr.rel (%p349) target = $region68
        $region67: #{tpu_custom_call.1} parent=51 // pred_region
          %352 = dma.done [#allocation11], 1024
        $region68: #{tpu_custom_call.1} parent=51 // pred_fallthru
          _
        %p353 = pneg %p56
        %p354 = pneg %p53
        %s355 = sand.u32 %s69, 1
        %s356 = scalar_lea.sflag [#allocation5], %s355
        %s357 = sand.u32 %s69, 1
        %s358 = smul.addr %s357, 128
        %s359 = scalar_lea.vmem [#allocation4], %s358
        %p360 = pneg %p82
        %p361 = pneg %p79
        %p362 = pneg %p103
        %p363 = pneg %p100
        %p364 = pneg %p124
        %p365 = pneg %p121
        %p366 = pneg %p145
        %p367 = pneg %p142
        %p368 = pneg %p166
        %p369 = pneg %p163
        %p370 = pneg %p187
        %p371 = pneg %p184
        %p372 = pneg %p208
        %p373 = pneg %p205
        %p374 = pneg %p234
        %p375 = pneg %p231
        %s376 = sand.u32 %s221, 1
        %s377 = scalar_lea.sflag [#allocation6], %s376
        %s378 = sand.u32 %s221, 1
        %s379 = smul.addr %s378, 128
        %s380 = scalar_lea.vmem [#allocation12], %s379
        %p382 = scmp.eq.s32.totalorder %s33, 0
        // Predicated region
        $region69: #{tpu_custom_call.1} parent=51 // pred_check
          %p383 = pneg %p382
        $region70: #{tpu_custom_call.1} parent=51 // pred_check_branch
          %385 = sbr.rel (%p383) target = $region72
        $region71: #{tpu_custom_call.1} parent=51 // pred_region
          %386 = vst [vmem:[#allocation2] sm:$0xff] 0.0
          %387 = vst [vmem:[#allocation2 + $0x8] sm:$0xff] 0.0
          %388 = vst [vmem:[#allocation2 + $0x10] sm:$0xff] 0.0
          %389 = vst [vmem:[#allocation2 + $0x18] sm:$0xff] 0.0
          %390 = vst [vmem:[#allocation2 + $0x20] sm:$0xff] 0.0
          %391 = vst [vmem:[#allocation2 + $0x28] sm:$0xff] 0.0
          %392 = vst [vmem:[#allocation2 + $0x30] sm:$0xff] 0.0
          %393 = vst [vmem:[#allocation2 + $0x38] sm:$0xff] 0.0
          %394 = vst [vmem:[#allocation2 + $0x40] sm:$0xff] 0.0
          %395 = vst [vmem:[#allocation2 + $0x48] sm:$0xff] 0.0
          %396 = vst [vmem:[#allocation2 + $0x50] sm:$0xff] 0.0
          %397 = vst [vmem:[#allocation2 + $0x58] sm:$0xff] 0.0
          %398 = vst [vmem:[#allocation2 + $0x60] sm:$0xff] 0.0
          %399 = vst [vmem:[#allocation2 + $0x68] sm:$0xff] 0.0
          %400 = vst [vmem:[#allocation2 + $0x70] sm:$0xff] 0.0
          %401 = vst [vmem:[#allocation2 + $0x78] sm:$0xff] 0.0
        $region72: #{tpu_custom_call.1} parent=51 // pred_fallthru
          _
        %s402 = sld [smem:[#allocation3]]
        %s403 = sadd.f32 %s402, 1.0
        %s404 = smul.u32 %s33, 16
        %s405 = smul.addr %s404, 4
        %s406 = scalar_lea.vmem [#allocation7], %s405
        %v407 = vld [vmem:[%s406] sm:$0xf]
        %v408 = vld [vmem:[%s406 + $0x4] sm:$0xf]
        %v409 = vld [vmem:[%s406 + $0x8] sm:$0xf]
        %v410 = vld [vmem:[%s406 + $0xc] sm:$0xf]
        %v411 = vld [vmem:[%s406 + $0x10] sm:$0xf]
        %v412 = vld [vmem:[%s406 + $0x14] sm:$0xf]
        %v413 = vld [vmem:[%s406 + $0x18] sm:$0xf]
        %v414 = vld [vmem:[%s406 + $0x1c] sm:$0xf]
        %v415 = vld [vmem:[%s406 + $0x20] sm:$0xf]
        %v416 = vld [vmem:[%s406 + $0x24] sm:$0xf]
        %v417 = vld [vmem:[%s406 + $0x28] sm:$0xf]
        %v418 = vld [vmem:[%s406 + $0x2c] sm:$0xf]
        %v419 = vld [vmem:[%s406 + $0x30] sm:$0xf]
        %v420 = vld [vmem:[%s406 + $0x34] sm:$0xf]
        %v421 = vld [vmem:[%s406 + $0x38] sm:$0xf]
        %v422 = vld [vmem:[%s406 + $0x3c] sm:$0xf]
        %v423 = vld [vmem:[%s336] sm:$0xff]
        %v424 = vld [vmem:[%s336 + $0x8] sm:$0xff]
        %v425 = vld [vmem:[%s336 + $0x10] sm:$0xff]
        %v426 = vld [vmem:[%s336 + $0x18] sm:$0xff]
        %v427 = vld [vmem:[%s336 + $0x20] sm:$0xff]
        %v428 = vld [vmem:[%s336 + $0x28] sm:$0xff]
        %v429 = vld [vmem:[%s336 + $0x30] sm:$0xff]
        %v430 = vld [vmem:[%s336 + $0x38] sm:$0xff]
        %v431 = vld [vmem:[%s336 + $0x40] sm:$0xff]
        %v432 = vld [vmem:[%s336 + $0x48] sm:$0xff]
        %v433 = vld [vmem:[%s336 + $0x50] sm:$0xff]
        %v434 = vld [vmem:[%s336 + $0x58] sm:$0xff]
        %v435 = vld [vmem:[%s336 + $0x60] sm:$0xff]
        %v436 = vld [vmem:[%s336 + $0x68] sm:$0xff]
        %v437 = vld [vmem:[%s336 + $0x70] sm:$0xff]
        %v438 = vld [vmem:[%s336 + $0x78] sm:$0xff]
        %v439 = vpack.c.bf16 %v424, %v423
        %v440 = vpack.c.bf16 %v426, %v425
        %v441 = vpack.c.bf16 %v428, %v427
        %v442 = vpack.c.bf16 %v430, %v429
        %v443 = vpack.c.bf16 %v432, %v431
        %v444 = vpack.c.bf16 %v434, %v433
        %v445 = vpack.c.bf16 %v436, %v435
        %v446 = vpack.c.bf16 %v438, %v437
        %v463 = vunpack.c.l.b16 %v407
        %v464 = vunpack.c.l.b16 %v408
        %v465 = vunpack.c.l.b16 %v409
        %v466 = vunpack.c.l.b16 %v410
        %v467 = vunpack.c.l.b16 %v411
        %v468 = vunpack.c.l.b16 %v412
        %v469 = vunpack.c.l.b16 %v413
        %v470 = vunpack.c.l.b16 %v414
        %v471 = vunpack.c.l.b16 %v415
        %v472 = vunpack.c.l.b16 %v416
        %v473 = vunpack.c.l.b16 %v417
        %v474 = vunpack.c.l.b16 %v418
        %v475 = vunpack.c.l.b16 %v419
        %v476 = vunpack.c.l.b16 %v420
        %v477 = vunpack.c.l.b16 %v421
        %v478 = vunpack.c.l.b16 %v422
        %v479 = vpack.c.b16 %v464, %v463
        %v480 = vpack.c.b16 %v466, %v465
        %v481 = vpack.c.b16 %v468, %v467
        %v482 = vpack.c.b16 %v470, %v469
        %v483 = vpack.c.b16 %v472, %v471
        %v484 = vpack.c.b16 %v474, %v473
        %v485 = vpack.c.b16 %v476, %v475
        %v486 = vpack.c.b16 %v478, %v477
        %495 = vmatprep.subr.bf16.mxu0 0
        %496 = vmatpush1.bf16.msra.mxu0 %v439
        %497 = vmatprep.subr.bf16.mxu0 0
        %498 = vmatpush1.bf16.msra.mxu0 %v440
        %499 = vmatprep.subr.bf16.mxu0 0
        %500 = vmatpush1.bf16.msra.mxu0 %v441
        %501 = vmatprep.subr.bf16.mxu0 0
        %502 = vmatpush1.bf16.msra.mxu0 %v442
        %503 = vmatprep.subr.bf16.mxu0 0
        %504 = vmatpush1.bf16.msra.mxu0 %v443
        %505 = vmatprep.subr.bf16.mxu0 0
        %506 = vmatpush1.bf16.msra.mxu0 %v444
        %507 = vmatprep.subr.bf16.mxu0 0
        %508 = vmatpush1.bf16.msra.mxu0 %v445
        %509 = vmatprep.subr.bf16.mxu0 0
        %510 = vmatpush1.bf16.msra.mxu0 %v446
        %511 = vmatprep.subr.bf16.mxu0 0
        %512 = vmatpush1.bf16.msra.mxu0 0
        %513 = vmatprep.subr.bf16.mxu0 0
        %514 = vmatpush1.bf16.msra.mxu0 0
        %515 = vmatprep.subr.bf16.mxu0 0
        %516 = vmatpush1.bf16.msra.mxu0 0
        %517 = vmatprep.subr.bf16.mxu0 0
        %518 = vmatpush1.bf16.msra.mxu0 0
        %519 = vmatprep.subr.bf16.mxu0 0
        %520 = vmatpush1.bf16.msra.mxu0 0
        %521 = vmatprep.subr.bf16.mxu0 0
        %522 = vmatpush1.bf16.msra.mxu0 0
        %523 = vmatprep.subr.bf16.mxu0 0
        %524 = vmatpush1.bf16.msra.mxu0 0
        %525 = vmatprep.subr.bf16.mxu0 0
        %526 = vmatpush1.bf16.msra.mxu0 0
        %527 = vmatprep.mubr.bf16.mxu0 0
        %528 = vmatmul.mubr.bf16.gmra.mrb[0].mxu0 %v479
        %v529 = vpop.f32.mrb[0].mxu0
        %v530 = vadd.f32 0.0, %v529
        %v531 = vpop.f32.mrb[0].mxu0
        %v532 = vpop.f32.mrb[0].mxu0
        %v533 = vadd.f32 0.0, %v532
        %v534 = vpop.f32.mrb[0].mxu0
        %535 = vmatprep.mubr.bf16.mxu0 0
        %536 = vmatmul.mubr.bf16.gmra.mrb[0].mxu0 %v480
        %v537 = vpop.f32.mrb[0].mxu0
        %v538 = vadd.f32 0.0, %v537
        %v539 = vpop.f32.mrb[0].mxu0
        %v540 = vpop.f32.mrb[0].mxu0
        %v541 = vadd.f32 0.0, %v540
        %v542 = vpop.f32.mrb[0].mxu0
        %543 = vmatprep.mubr.bf16.mxu0 0
        %544 = vmatmul.mubr.bf16.gmra.mrb[0].mxu0 %v481
        %v545 = vpop.f32.mrb[0].mxu0
        %v546 = vadd.f32 0.0, %v545
        %v547 = vpop.f32.mrb[0].mxu0
        %v548 = vpop.f32.mrb[0].mxu0
        %v549 = vadd.f32 0.0, %v548
        %v550 = vpop.f32.mrb[0].mxu0
        %551 = vmatprep.mubr.bf16.mxu0 0
        %552 = vmatmul.mubr.bf16.gmra.mrb[0].mxu0 %v482
        %v553 = vpop.f32.mrb[0].mxu0
        %v554 = vadd.f32 0.0, %v553
        %v555 = vpop.f32.mrb[0].mxu0
        %v556 = vpop.f32.mrb[0].mxu0
        %v557 = vadd.f32 0.0, %v556
        %v558 = vpop.f32.mrb[0].mxu0
        %559 = vmatprep.mubr.bf16.mxu0 0
        %560 = vmatmul.mubr.bf16.gmra.mrb[0].mxu0 %v483
        %v561 = vpop.f32.mrb[0].mxu0
        %v562 = vadd.f32 0.0, %v561
        %v563 = vpop.f32.mrb[0].mxu0
        %v564 = vpop.f32.mrb[0].mxu0
        %v565 = vadd.f32 0.0, %v564
        %v566 = vpop.f32.mrb[0].mxu0
        %567 = vmatprep.mubr.bf16.mxu0 0
        %568 = vmatmul.mubr.bf16.gmra.mrb[0].mxu0 %v484
        %v569 = vpop.f32.mrb[0].mxu0
        %v570 = vadd.f32 0.0, %v569
        %v571 = vpop.f32.mrb[0].mxu0
        %v572 = vpop.f32.mrb[0].mxu0
        %v573 = vadd.f32 0.0, %v572
        %v574 = vpop.f32.mrb[0].mxu0
        %575 = vmatprep.mubr.bf16.mxu0 0
        %576 = vmatmul.mubr.bf16.gmra.mrb[0].mxu0 %v485
        %v577 = vpop.f32.mrb[0].mxu0
        %v578 = vadd.f32 0.0, %v577
        %v579 = vpop.f32.mrb[0].mxu0
        %v580 = vpop.f32.mrb[0].mxu0
        %v581 = vadd.f32 0.0, %v580
        %v582 = vpop.f32.mrb[0].mxu0
        %583 = vmatprep.mubr.bf16.mxu0 0
        %584 = vmatmul.mubr.bf16.gmra.mrb[0].mxu0 %v486
        %v585 = vpop.f32.mrb[0].mxu0
        %v586 = vadd.f32 0.0, %v585
        %v587 = vpop.f32.mrb[0].mxu0
        %v588 = vpop.f32.mrb[0].mxu0
        %v589 = vadd.f32 0.0, %v588
        %v590 = vpop.f32.mrb[0].mxu0
        %591 = vdwg.mxu0
        %v592 = vstv %s403
        %v593 = vmul.f32 %v592, %v423
        %v594 = vmul.f32 %v592, %v424
        %v595 = vmul.f32 %v592, %v425
        %v596 = vmul.f32 %v592, %v426
        %v597 = vmul.f32 %v592, %v427
        %v598 = vmul.f32 %v592, %v428
        %v599 = vmul.f32 %v592, %v429
        %v600 = vmul.f32 %v592, %v430
        %v601 = vmul.f32 %v592, %v431
        %v602 = vmul.f32 %v592, %v432
        %v603 = vmul.f32 %v592, %v433
        %v604 = vmul.f32 %v592, %v434
        %v605 = vmul.f32 %v592, %v435
        %v606 = vmul.f32 %v592, %v436
        %v607 = vmul.f32 %v592, %v437
        %v608 = vmul.f32 %v592, %v438
        %v609 = vadd.f32 %v593, %v530
        %v610 = vadd.f32 %v594, %v533
        %v611 = vadd.f32 %v595, %v538
        %v612 = vadd.f32 %v596, %v541
        %v613 = vadd.f32 %v597, %v546
        %v614 = vadd.f32 %v598, %v549
        %v615 = vadd.f32 %v599, %v554
        %v616 = vadd.f32 %v600, %v557
        %v617 = vadd.f32 %v601, %v562
        %v618 = vadd.f32 %v602, %v565
        %v619 = vadd.f32 %v603, %v570
        %v620 = vadd.f32 %v604, %v573
        %v621 = vadd.f32 %v605, %v578
        %v622 = vadd.f32 %v606, %v581
        %v623 = vadd.f32 %v607, %v586
        %v624 = vadd.f32 %v608, %v589
        %v625 = vpack.c.bf16 %v610, %v609
        %v626 = vpack.c.bf16 %v612, %v611
        %v627 = vpack.c.bf16 %v614, %v613
        %v628 = vpack.c.bf16 %v616, %v615
        %v629 = vpack.c.bf16 %v618, %v617
        %v630 = vpack.c.bf16 %v620, %v619
        %v631 = vpack.c.bf16 %v622, %v621
        %v632 = vpack.c.bf16 %v624, %v623
        %633 = vmatprep.subr.bf16.mxu0 0
        %634 = vmatpush1.bf16.msra.mxu0 %v625
        %635 = vmatprep.subr.bf16.mxu0 0
        %636 = vmatpush1.bf16.msra.mxu0 %v626
        %637 = vmatprep.subr.bf16.mxu0 0
        %638 = vmatpush1.bf16.msra.mxu0 %v627
        %639 = vmatprep.subr.bf16.mxu0 0
        %640 = vmatpush1.bf16.msra.mxu0 %v628
        %641 = vmatprep.subr.bf16.mxu0 0
        %642 = vmatpush1.bf16.msra.mxu0 %v629
        %643 = vmatprep.subr.bf16.mxu0 0
        %644 = vmatpush1.bf16.msra.mxu0 %v630
        %645 = vmatprep.subr.bf16.mxu0 0
        %646 = vmatpush1.bf16.msra.mxu0 %v631
        %647 = vmatprep.subr.bf16.mxu0 0
        %648 = vmatpush1.bf16.msra.mxu0 %v632
        %649 = vmatprep.subr.bf16.mxu0 0
        %650 = vmatpush1.bf16.msra.mxu0 0
        %651 = vmatprep.subr.bf16.mxu0 0
        %652 = vmatpush1.bf16.msra.mxu0 0
        %653 = vmatprep.subr.bf16.mxu0 0
        %654 = vmatpush1.bf16.msra.mxu0 0
        %655 = vmatprep.subr.bf16.mxu0 0
        %656 = vmatpush1.bf16.msra.mxu0 0
        %657 = vmatprep.subr.bf16.mxu0 0
        %658 = vmatpush1.bf16.msra.mxu0 0
        %659 = vmatprep.subr.bf16.mxu0 0
        %660 = vmatpush1.bf16.msra.mxu0 0
        %661 = vmatprep.subr.bf16.mxu0 0
        %662 = vmatpush1.bf16.msra.mxu0 0
        %663 = vmatprep.subr.bf16.mxu0 0
        %664 = vmatpush1.bf16.msra.mxu0 0
        %665 = vmatprep.mubr.bf16.mxu0 0
        %666 = vmatmul.mubr.bf16.gmra.mrb[0].mxu0 %v479
        %v667 = vpop.f32.mrb[0].mxu0
        %v668 = vadd.f32 0.0, %v667
        %v669 = vpop.f32.mrb[0].mxu0
        %v670 = vpop.f32.mrb[0].mxu0
        %v671 = vadd.f32 0.0, %v670
        %v672 = vpop.f32.mrb[0].mxu0
        %673 = vmatprep.mubr.bf16.mxu0 0
        %674 = vmatmul.mubr.bf16.gmra.mrb[0].mxu0 %v480
        %v675 = vpop.f32.mrb[0].mxu0
        %v676 = vadd.f32 0.0, %v675
        %v677 = vpop.f32.mrb[0].mxu0
        %v678 = vpop.f32.mrb[0].mxu0
        %v679 = vadd.f32 0.0, %v678
        %v680 = vpop.f32.mrb[0].mxu0
        %681 = vmatprep.mubr.bf16.mxu0 0
        %682 = vmatmul.mubr.bf16.gmra.mrb[0].mxu0 %v481
        %v683 = vpop.f32.mrb[0].mxu0
        %v684 = vadd.f32 0.0, %v683
        %v685 = vpop.f32.mrb[0].mxu0
        %v686 = vpop.f32.mrb[0].mxu0
        %v687 = vadd.f32 0.0, %v686
        %v688 = vpop.f32.mrb[0].mxu0
        %689 = vmatprep.mubr.bf16.mxu0 0
        %690 = vmatmul.mubr.bf16.gmra.mrb[0].mxu0 %v482
        %v691 = vpop.f32.mrb[0].mxu0
        %v692 = vadd.f32 0.0, %v691
        %v693 = vpop.f32.mrb[0].mxu0
        %v694 = vpop.f32.mrb[0].mxu0
        %v695 = vadd.f32 0.0, %v694
        %v696 = vpop.f32.mrb[0].mxu0
        %697 = vmatprep.mubr.bf16.mxu0 0
        %698 = vmatmul.mubr.bf16.gmra.mrb[0].mxu0 %v483
        %v699 = vpop.f32.mrb[0].mxu0
        %v700 = vadd.f32 0.0, %v699
        %v701 = vpop.f32.mrb[0].mxu0
        %v702 = vpop.f32.mrb[0].mxu0
        %v703 = vadd.f32 0.0, %v702
        %v704 = vpop.f32.mrb[0].mxu0
        %705 = vmatprep.mubr.bf16.mxu0 0
        %706 = vmatmul.mubr.bf16.gmra.mrb[0].mxu0 %v484
        %v707 = vpop.f32.mrb[0].mxu0
        %v708 = vadd.f32 0.0, %v707
        %v709 = vpop.f32.mrb[0].mxu0
        %v710 = vpop.f32.mrb[0].mxu0
        %v711 = vadd.f32 0.0, %v710
        %v712 = vpop.f32.mrb[0].mxu0
        %713 = vmatprep.mubr.bf16.mxu0 0
        %714 = vmatmul.mubr.bf16.gmra.mrb[0].mxu0 %v485
        %v715 = vpop.f32.mrb[0].mxu0
        %v716 = vadd.f32 0.0, %v715
        %v717 = vpop.f32.mrb[0].mxu0
        %v718 = vpop.f32.mrb[0].mxu0
        %v719 = vadd.f32 0.0, %v718
        %v720 = vpop.f32.mrb[0].mxu0
        %721 = vmatprep.mubr.bf16.mxu0 0
        %722 = vmatmul.mubr.bf16.gmra.mrb[0].mxu0 %v486
        %v723 = vpop.f32.mrb[0].mxu0
        %v724 = vadd.f32 0.0, %v723
        %v725 = vpop.f32.mrb[0].mxu0
        %v726 = vpop.f32.mrb[0].mxu0
        %v727 = vadd.f32 0.0, %v726
        %v728 = vpop.f32.mrb[0].mxu0
        %729 = vdwg.mxu0
        %v730 = vmul.f32 %v592, %v609
        %v731 = vmul.f32 %v592, %v610
        %v732 = vmul.f32 %v592, %v611
        %v733 = vmul.f32 %v592, %v612
        %v734 = vmul.f32 %v592, %v613
        %v735 = vmul.f32 %v592, %v614
        %v736 = vmul.f32 %v592, %v615
        %v737 = vmul.f32 %v592, %v616
        %v738 = vmul.f32 %v592, %v617
        %v739 = vmul.f32 %v592, %v618
        %v740 = vmul.f32 %v592, %v619
        %v741 = vmul.f32 %v592, %v620
        %v742 = vmul.f32 %v592, %v621
        %v743 = vmul.f32 %v592, %v622
        %v744 = vmul.f32 %v592, %v623
        %v745 = vmul.f32 %v592, %v624
        %v746 = vadd.f32 %v730, %v668
        %v747 = vadd.f32 %v731, %v671
        %v748 = vadd.f32 %v732, %v676
        %v749 = vadd.f32 %v733, %v679
        %v750 = vadd.f32 %v734, %v684
        %v751 = vadd.f32 %v735, %v687
        %v752 = vadd.f32 %v736, %v692
        %v753 = vadd.f32 %v737, %v695
        %v754 = vadd.f32 %v738, %v700
        %v755 = vadd.f32 %v739, %v703
        %v756 = vadd.f32 %v740, %v708
        %v757 = vadd.f32 %v741, %v711
        %v758 = vadd.f32 %v742, %v716
        %v759 = vadd.f32 %v743, %v719
        %v760 = vadd.f32 %v744, %v724
        %v761 = vadd.f32 %v745, %v727
        %v762 = vpack.c.bf16 %v747, %v746
        %v763 = vpack.c.bf16 %v749, %v748
        %v764 = vpack.c.bf16 %v751, %v750
        %v765 = vpack.c.bf16 %v753, %v752
        %v766 = vpack.c.bf16 %v755, %v754
        %v767 = vpack.c.bf16 %v757, %v756
        %v768 = vpack.c.bf16 %v759, %v758
        %v769 = vpack.c.bf16 %v761, %v760
        %v770 = vld [vmem:[#allocation2] sm:$0xff]
        %v771 = vld [vmem:[#allocation2 + $0x8] sm:$0xff]
        %v772 = vld [vmem:[#allocation2 + $0x10] sm:$0xff]
        %v773 = vld [vmem:[#allocation2 + $0x18] sm:$0xff]
        %v774 = vld [vmem:[#allocation2 + $0x20] sm:$0xff]
        %v775 = vld [vmem:[#allocation2 + $0x28] sm:$0xff]
        %v776 = vld [vmem:[#allocation2 + $0x30] sm:$0xff]
        %v777 = vld [vmem:[#allocation2 + $0x38] sm:$0xff]
        %v778 = vld [vmem:[#allocation2 + $0x40] sm:$0xff]
        %v779 = vld [vmem:[#allocation2 + $0x48] sm:$0xff]
        %v780 = vld [vmem:[#allocation2 + $0x50] sm:$0xff]
        %v781 = vld [vmem:[#allocation2 + $0x58] sm:$0xff]
        %v782 = vld [vmem:[#allocation2 + $0x60] sm:$0xff]
        %v783 = vld [vmem:[#allocation2 + $0x68] sm:$0xff]
        %v784 = vld [vmem:[#allocation2 + $0x70] sm:$0xff]
        %v785 = vld [vmem:[#allocation2 + $0x78] sm:$0xff]
        %s786 = smul.u32 %s33, 32
        %s787 = smul.addr %s786, 4
        %s788 = scalar_lea.vmem [#allocation9], %s787
        %v789 = vld [vmem:[%s788] sm:$0xf]
        %v790 = vld [vmem:[%s788 + $0x4] sm:$0xf]
        %v791 = vld [vmem:[%s788 + $0x8] sm:$0xf]
        %v792 = vld [vmem:[%s788 + $0xc] sm:$0xf]
        %v793 = vld [vmem:[%s788 + $0x10] sm:$0xf]
        %v794 = vld [vmem:[%s788 + $0x14] sm:$0xf]
        %v795 = vld [vmem:[%s788 + $0x18] sm:$0xf]
        %v796 = vld [vmem:[%s788 + $0x1c] sm:$0xf]
        %v797 = vld [vmem:[%s788 + $0x20] sm:$0xf]
        %v798 = vld [vmem:[%s788 + $0x24] sm:$0xf]
        %v799 = vld [vmem:[%s788 + $0x28] sm:$0xf]
        %v800 = vld [vmem:[%s788 + $0x2c] sm:$0xf]
        %v801 = vld [vmem:[%s788 + $0x30] sm:$0xf]
        %v802 = vld [vmem:[%s788 + $0x34] sm:$0xf]
        %v803 = vld [vmem:[%s788 + $0x38] sm:$0xf]
        %v804 = vld [vmem:[%s788 + $0x3c] sm:$0xf]
        %v805 = vld [vmem:[%s788 + $0x40] sm:$0xf]
        %v806 = vld [vmem:[%s788 + $0x44] sm:$0xf]
        %v807 = vld [vmem:[%s788 + $0x48] sm:$0xf]
        %v808 = vld [vmem:[%s788 + $0x4c] sm:$0xf]
        %v809 = vld [vmem:[%s788 + $0x50] sm:$0xf]
        %v810 = vld [vmem:[%s788 + $0x54] sm:$0xf]
        %v811 = vld [vmem:[%s788 + $0x58] sm:$0xf]
        %v812 = vld [vmem:[%s788 + $0x5c] sm:$0xf]
        %v813 = vld [vmem:[%s788 + $0x60] sm:$0xf]
        %v814 = vld [vmem:[%s788 + $0x64] sm:$0xf]
        %v815 = vld [vmem:[%s788 + $0x68] sm:$0xf]
        %v816 = vld [vmem:[%s788 + $0x6c] sm:$0xf]
        %v817 = vld [vmem:[%s788 + $0x70] sm:$0xf]
        %v818 = vld [vmem:[%s788 + $0x74] sm:$0xf]
        %v819 = vld [vmem:[%s788 + $0x78] sm:$0xf]
        %v820 = vld [vmem:[%s788 + $0x7c] sm:$0xf]
        %v853 = vunpack.c.l.b16 %v789
        %v854 = vunpack.c.l.b16 %v790
        %v855 = vunpack.c.l.b16 %v791
        %v856 = vunpack.c.l.b16 %v792
        %v857 = vunpack.c.l.b16 %v793
        %v858 = vunpack.c.l.b16 %v794
        %v859 = vunpack.c.l.b16 %v795
        %v860 = vunpack.c.l.b16 %v796
        %v861 = vunpack.c.l.b16 %v797
        %v862 = vunpack.c.l.b16 %v798
        %v863 = vunpack.c.l.b16 %v799
        %v864 = vunpack.c.l.b16 %v800
        %v865 = vunpack.c.l.b16 %v801
        %v866 = vunpack.c.l.b16 %v802
        %v867 = vunpack.c.l.b16 %v803
        %v868 = vunpack.c.l.b16 %v804
        %v869 = vunpack.c.l.b16 %v805
        %v870 = vunpack.c.l.b16 %v806
        %v871 = vunpack.c.l.b16 %v807
        %v872 = vunpack.c.l.b16 %v808
        %v873 = vunpack.c.l.b16 %v809
        %v874 = vunpack.c.l.b16 %v810
        %v875 = vunpack.c.l.b16 %v811
        %v876 = vunpack.c.l.b16 %v812
        %v877 = vunpack.c.l.b16 %v813
        %v878 = vunpack.c.l.b16 %v814
        %v879 = vunpack.c.l.b16 %v815
        %v880 = vunpack.c.l.b16 %v816
        %v881 = vunpack.c.l.b16 %v817
        %v882 = vunpack.c.l.b16 %v818
        %v883 = vunpack.c.l.b16 %v819
        %v884 = vunpack.c.l.b16 %v820
        %v885 = vpack.c.b16 %v854, %v853
        %v886 = vpack.c.b16 %v856, %v855
        %v887 = vpack.c.b16 %v858, %v857
        %v888 = vpack.c.b16 %v860, %v859
        %v889 = vpack.c.b16 %v862, %v861
        %v890 = vpack.c.b16 %v864, %v863
        %v891 = vpack.c.b16 %v866, %v865
        %v892 = vpack.c.b16 %v868, %v867
        %v893 = vpack.c.b16 %v870, %v869
        %v894 = vpack.c.b16 %v872, %v871
        %v895 = vpack.c.b16 %v874, %v873
        %v896 = vpack.c.b16 %v876, %v875
        %v897 = vpack.c.b16 %v878, %v877
        %v898 = vpack.c.b16 %v880, %v879
        %v899 = vpack.c.b16 %v882, %v881
        %v900 = vpack.c.b16 %v884, %v883
        %917 = vmatprep.subr.bf16.mxu0 0
        %918 = vmatpush1.bf16.msra.mxu0 %v885
        %919 = vmatprep.subr.bf16.mxu0 0
        %920 = vmatpush1.bf16.msra.mxu0 %v886
        %921 = vmatprep.subr.bf16.mxu0 0
        %922 = vmatpush1.bf16.msra.mxu0 %v887
        %923 = vmatprep.subr.bf16.mxu0 0
        %924 = vmatpush1.bf16.msra.mxu0 %v888
        %925 = vmatprep.subr.bf16.mxu0 0
        %926 = vmatpush1.bf16.msra.mxu0 %v889
        %927 = vmatprep.subr.bf16.mxu0 0
        %928 = vmatpush1.bf16.msra.mxu0 %v890
        %929 = vmatprep.subr.bf16.mxu0 0
        %930 = vmatpush1.bf16.msra.mxu0 %v891
        %931 = vmatprep.subr.bf16.mxu0 0
        %932 = vmatpush1.bf16.msra.mxu0 %v892
        %933 = vmatprep.subr.bf16.mxu0 0
        %934 = vmatpush1.bf16.msra.mxu0 %v893
        %935 = vmatprep.subr.bf16.mxu0 0
        %936 = vmatpush1.bf16.msra.mxu0 %v894
        %937 = vmatprep.subr.bf16.mxu0 0
        %938 = vmatpush1.bf16.msra.mxu0 %v895
        %939 = vmatprep.subr.bf16.mxu0 0
        %940 = vmatpush1.bf16.msra.mxu0 %v896
        %941 = vmatprep.subr.bf16.mxu0 0
        %942 = vmatpush1.bf16.msra.mxu0 %v897
        %943 = vmatprep.subr.bf16.mxu0 0
        %944 = vmatpush1.bf16.msra.mxu0 %v898
        %945 = vmatprep.subr.bf16.mxu0 0
        %946 = vmatpush1.bf16.msra.mxu0 %v899
        %947 = vmatprep.subr.bf16.mxu0 0
        %948 = vmatpush1.bf16.msra.mxu0 %v900
        %949 = vmatprep.mubr.bf16.mxu0 %v762
        %950 = vmatmul.mubr.bf16.gmra.mrb[0].mxu0 %v625
        %v951 = vpop.f32.mrb[0].mxu0
        %v952 = vadd.f32 0.0, %v951
        %v953 = vpop.f32.mrb[0].mxu0
        %v954 = vpop.f32.mrb[0].mxu0
        %v955 = vadd.f32 0.0, %v954
        %v956 = vpop.f32.mrb[0].mxu0
        %957 = vmatprep.mubr.bf16.mxu0 %v763
        %958 = vmatmul.mubr.bf16.gmra.mrb[0].mxu0 %v626
        %v959 = vpop.f32.mrb[0].mxu0
        %v960 = vadd.f32 0.0, %v959
        %v961 = vpop.f32.mrb[0].mxu0
        %v962 = vpop.f32.mrb[0].mxu0
        %v963 = vadd.f32 0.0, %v962
        %v964 = vpop.f32.mrb[0].mxu0
        %965 = vmatprep.mubr.bf16.mxu0 %v764
        %966 = vmatmul.mubr.bf16.gmra.mrb[0].mxu0 %v627
        %v967 = vpop.f32.mrb[0].mxu0
        %v968 = vadd.f32 0.0, %v967
        %v969 = vpop.f32.mrb[0].mxu0
        %v970 = vpop.f32.mrb[0].mxu0
        %v971 = vadd.f32 0.0, %v970
        %v972 = vpop.f32.mrb[0].mxu0
        %973 = vmatprep.mubr.bf16.mxu0 %v765
        %974 = vmatmul.mubr.bf16.gmra.mrb[0].mxu0 %v628
        %v975 = vpop.f32.mrb[0].mxu0
        %v976 = vadd.f32 0.0, %v975
        %v977 = vpop.f32.mrb[0].mxu0
        %v978 = vpop.f32.mrb[0].mxu0
        %v979 = vadd.f32 0.0, %v978
        %v980 = vpop.f32.mrb[0].mxu0
        %981 = vmatprep.mubr.bf16.mxu0 %v766
        %982 = vmatmul.mubr.bf16.gmra.mrb[0].mxu0 %v629
        %v983 = vpop.f32.mrb[0].mxu0
        %v984 = vadd.f32 0.0, %v983
        %v985 = vpop.f32.mrb[0].mxu0
        %v986 = vpop.f32.mrb[0].mxu0
        %v987 = vadd.f32 0.0, %v986
        %v988 = vpop.f32.mrb[0].mxu0
        %989 = vmatprep.mubr.bf16.mxu0 %v767
        %990 = vmatmul.mubr.bf16.gmra.mrb[0].mxu0 %v630
        %v991 = vpop.f32.mrb[0].mxu0
        %v992 = vadd.f32 0.0, %v991
        %v993 = vpop.f32.mrb[0].mxu0
        %v994 = vpop.f32.mrb[0].mxu0
        %v995 = vadd.f32 0.0, %v994
        %v996 = vpop.f32.mrb[0].mxu0
        %997 = vmatprep.mubr.bf16.mxu0 %v768
        %998 = vmatmul.mubr.bf16.gmra.mrb[0].mxu0 %v631
        %v999 = vpop.f32.mrb[0].mxu0
        %v1000 = vadd.f32 0.0, %v999
        %v1001 = vpop.f32.mrb[0].mxu0
        %v1002 = vpop.f32.mrb[0].mxu0
        %v1003 = vadd.f32 0.0, %v1002
        %v1004 = vpop.f32.mrb[0].mxu0
        %1005 = vmatprep.mubr.bf16.mxu0 %v769
        %1006 = vmatmul.mubr.bf16.gmra.mrb[0].mxu0 %v632
        %v1007 = vpop.f32.mrb[0].mxu0
        %v1008 = vadd.f32 0.0, %v1007
        %v1009 = vpop.f32.mrb[0].mxu0
        %v1010 = vpop.f32.mrb[0].mxu0
        %v1011 = vadd.f32 0.0, %v1010
        %v1012 = vpop.f32.mrb[0].mxu0
        %1013 = vdwg.mxu0
        %v1014 = vadd.f32 %v770, %v952
        %v1015 = vadd.f32 %v771, %v955
        %v1016 = vadd.f32 %v772, %v960
        %v1017 = vadd.f32 %v773, %v963
        %v1018 = vadd.f32 %v774, %v968
        %v1019 = vadd.f32 %v775, %v971
        %v1020 = vadd.f32 %v776, %v976
        %v1021 = vadd.f32 %v777, %v979
        %v1022 = vadd.f32 %v778, %v984
        %v1023 = vadd.f32 %v779, %v987
        %v1024 = vadd.f32 %v780, %v992
        %v1025 = vadd.f32 %v781, %v995
        %v1026 = vadd.f32 %v782, %v1000
        %v1027 = vadd.f32 %v783, %v1003
        %v1028 = vadd.f32 %v784, %v1008
        %v1029 = vadd.f32 %v785, %v1011
        %1030 = vst [vmem:[#allocation2] sm:$0xff] %v1014
        %1031 = vst [vmem:[#allocation2 + $0x8] sm:$0xff] %v1015
        %1032 = vst [vmem:[#allocation2 + $0x10] sm:$0xff] %v1016
        %1033 = vst [vmem:[#allocation2 + $0x18] sm:$0xff] %v1017
        %1034 = vst [vmem:[#allocation2 + $0x20] sm:$0xff] %v1018
        %1035 = vst [vmem:[#allocation2 + $0x28] sm:$0xff] %v1019
        %1036 = vst [vmem:[#allocation2 + $0x30] sm:$0xff] %v1020
        %1037 = vst [vmem:[#allocation2 + $0x38] sm:$0xff] %v1021
        %1038 = vst [vmem:[#allocation2 + $0x40] sm:$0xff] %v1022
        %1039 = vst [vmem:[#allocation2 + $0x48] sm:$0xff] %v1023
        %1040 = vst [vmem:[#allocation2 + $0x50] sm:$0xff] %v1024
        %1041 = vst [vmem:[#allocation2 + $0x58] sm:$0xff] %v1025
        %1042 = vst [vmem:[#allocation2 + $0x60] sm:$0xff] %v1026
        %1043 = vst [vmem:[#allocation2 + $0x68] sm:$0xff] %v1027
        %1044 = vst [vmem:[#allocation2 + $0x70] sm:$0xff] %v1028
        %1045 = vst [vmem:[#allocation2 + $0x78] sm:$0xff] %v1029
        %p1046 = scmp.eq.s32.totalorder %s33, 1
        // Predicated region
        $region73: #{tpu_custom_call.1} parent=51 // pred_check
          %p1047 = pneg %p1046
        $region74: #{tpu_custom_call.1} parent=51 // pred_check_branch
          %1049 = sbr.rel (%p1047) target = $region76
        $region75: #{tpu_custom_call.1} parent=51 // pred_region
          %v1050 = vld [vmem:[#allocation2] sm:$0xff]
          %v1051 = vld [vmem:[#allocation2 + $0x8] sm:$0xff]
          %v1052 = vld [vmem:[#allocation2 + $0x10] sm:$0xff]
          %v1053 = vld [vmem:[#allocation2 + $0x18] sm:$0xff]
          %v1054 = vld [vmem:[#allocation2 + $0x20] sm:$0xff]
          %v1055 = vld [vmem:[#allocation2 + $0x28] sm:$0xff]
          %v1056 = vld [vmem:[#allocation2 + $0x30] sm:$0xff]
          %v1057 = vld [vmem:[#allocation2 + $0x38] sm:$0xff]
          %v1058 = vld [vmem:[#allocation2 + $0x40] sm:$0xff]
          %v1059 = vld [vmem:[#allocation2 + $0x48] sm:$0xff]
          %v1060 = vld [vmem:[#allocation2 + $0x50] sm:$0xff]
          %v1061 = vld [vmem:[#allocation2 + $0x58] sm:$0xff]
          %v1062 = vld [vmem:[#allocation2 + $0x60] sm:$0xff]
          %v1063 = vld [vmem:[#allocation2 + $0x68] sm:$0xff]
          %v1064 = vld [vmem:[#allocation2 + $0x70] sm:$0xff]
          %v1065 = vld [vmem:[#allocation2 + $0x78] sm:$0xff]
          %v1066 = vld [vmem:[%s4] sm:$0x1]
          %v1068 = vlaneseq
          %v1069 = vshrl.u32 %v1068, 7
          %v1070 = vsub.s32 0, %v1069
          %v1071 = vrot.slane %v1066, %v1070
          %v1073 = vmul.f32 %v1050, %v1071
          %v1074 = vmul.f32 %v1051, %v1071
          %v1075 = vmul.f32 %v1052, %v1071
          %v1076 = vmul.f32 %v1053, %v1071
          %v1077 = vmul.f32 %v1054, %v1071
          %v1078 = vmul.f32 %v1055, %v1071
          %v1079 = vmul.f32 %v1056, %v1071
          %v1080 = vmul.f32 %v1057, %v1071
          %v1081 = vmul.f32 %v1058, %v1071
          %v1082 = vmul.f32 %v1059, %v1071
          %v1083 = vmul.f32 %v1060, %v1071
          %v1084 = vmul.f32 %v1061, %v1071
          %v1085 = vmul.f32 %v1062, %v1071
          %v1086 = vmul.f32 %v1063, %v1071
          %v1087 = vmul.f32 %v1064, %v1071
          %v1088 = vmul.f32 %v1065, %v1071
          %v1089 = vld [vmem:[%s5] sm:$0x1]
          %v1091 = vlaneseq
          %v1092 = vshrl.u32 %v1091, 7
          %v1093 = vsub.s32 0, %v1092
          %v1094 = vrot.slane %v1089, %v1093
          %v1096 = vadd.f32 %v1073, %v1094
          %v1097 = vadd.f32 %v1074, %v1094
          %v1098 = vadd.f32 %v1075, %v1094
          %v1099 = vadd.f32 %v1076, %v1094
          %v1100 = vadd.f32 %v1077, %v1094
          %v1101 = vadd.f32 %v1078, %v1094
          %v1102 = vadd.f32 %v1079, %v1094
          %v1103 = vadd.f32 %v1080, %v1094
          %v1104 = vadd.f32 %v1081, %v1094
          %v1105 = vadd.f32 %v1082, %v1094
          %v1106 = vadd.f32 %v1083, %v1094
          %v1107 = vadd.f32 %v1084, %v1094
          %v1108 = vadd.f32 %v1085, %v1094
          %v1109 = vadd.f32 %v1086, %v1094
          %v1110 = vadd.f32 %v1087, %v1094
          %v1111 = vadd.f32 %v1088, %v1094
          %v1112 = vmax.f32 %v1096, 0.0
          %v1113 = vmax.f32 %v1097, 0.0
          %v1114 = vmax.f32 %v1098, 0.0
          %v1115 = vmax.f32 %v1099, 0.0
          %v1116 = vmax.f32 %v1100, 0.0
          %v1117 = vmax.f32 %v1101, 0.0
          %v1118 = vmax.f32 %v1102, 0.0
          %v1119 = vmax.f32 %v1103, 0.0
          %v1120 = vmax.f32 %v1104, 0.0
          %v1121 = vmax.f32 %v1105, 0.0
          %v1122 = vmax.f32 %v1106, 0.0
          %v1123 = vmax.f32 %v1107, 0.0
          %v1124 = vmax.f32 %v1108, 0.0
          %v1125 = vmax.f32 %v1109, 0.0
          %v1126 = vmax.f32 %v1110, 0.0
          %v1127 = vmax.f32 %v1111, 0.0
          %v1128 = vpack.c.bf16 %v1113, %v1112
          %v1129 = vpack.c.bf16 %v1115, %v1114
          %v1130 = vpack.c.bf16 %v1117, %v1116
          %v1131 = vpack.c.bf16 %v1119, %v1118
          %v1132 = vpack.c.bf16 %v1121, %v1120
          %v1133 = vpack.c.bf16 %v1123, %v1122
          %v1134 = vpack.c.bf16 %v1125, %v1124
          %v1135 = vpack.c.bf16 %v1127, %v1126
          %v1136 = vld [vmem:[#allocation10] sm:$0xf]
          %v1137 = vld [vmem:[#allocation10 + $0x4] sm:$0xf]
          %v1138 = vld [vmem:[#allocation10 + $0x8] sm:$0xf]
          %v1139 = vld [vmem:[#allocation10 + $0xc] sm:$0xf]
          %v1140 = vld [vmem:[#allocation10 + $0x10] sm:$0xf]
          %v1141 = vld [vmem:[#allocation10 + $0x14] sm:$0xf]
          %v1142 = vld [vmem:[#allocation10 + $0x18] sm:$0xf]
          %v1143 = vld [vmem:[#allocation10 + $0x1c] sm:$0xf]
          %v1144 = vld [vmem:[#allocation10 + $0x20] sm:$0xf]
          %v1145 = vld [vmem:[#allocation10 + $0x24] sm:$0xf]
          %v1146 = vld [vmem:[#allocation10 + $0x28] sm:$0xf]
          %v1147 = vld [vmem:[#allocation10 + $0x2c] sm:$0xf]
          %v1148 = vld [vmem:[#allocation10 + $0x30] sm:$0xf]
          %v1149 = vld [vmem:[#allocation10 + $0x34] sm:$0xf]
          %v1150 = vld [vmem:[#allocation10 + $0x38] sm:$0xf]
          %v1151 = vld [vmem:[#allocation10 + $0x3c] sm:$0xf]
          %v1152 = vld [vmem:[%s7] sm:$0x1]
          %v1154 = vlaneseq
          %v1155 = vshrl.u32 %v1154, 7
          %v1156 = vsub.s32 0, %v1155
          %v1157 = vrot.slane %v1152, %v1156
          %v1175 = vunpack.c.l.b16 %v1136
          %v1176 = vunpack.c.l.b16 %v1137
          %v1177 = vunpack.c.l.b16 %v1138
          %v1178 = vunpack.c.l.b16 %v1139
          %v1179 = vunpack.c.l.b16 %v1140
          %v1180 = vunpack.c.l.b16 %v1141
          %v1181 = vunpack.c.l.b16 %v1142
          %v1182 = vunpack.c.l.b16 %v1143
          %v1183 = vunpack.c.l.b16 %v1144
          %v1184 = vunpack.c.l.b16 %v1145
          %v1185 = vunpack.c.l.b16 %v1146
          %v1186 = vunpack.c.l.b16 %v1147
          %v1187 = vunpack.c.l.b16 %v1148
          %v1188 = vunpack.c.l.b16 %v1149
          %v1189 = vunpack.c.l.b16 %v1150
          %v1190 = vunpack.c.l.b16 %v1151
          %v1191 = vpack.c.b16 %v1176, %v1175
          %v1192 = vpack.c.b16 %v1178, %v1177
          %v1193 = vpack.c.b16 %v1180, %v1179
          %v1194 = vpack.c.b16 %v1182, %v1181
          %v1195 = vpack.c.b16 %v1184, %v1183
          %v1196 = vpack.c.b16 %v1186, %v1185
          %v1197 = vpack.c.b16 %v1188, %v1187
          %v1198 = vpack.c.b16 %v1190, %v1189
          %1207 = vmatprep.subr.bf16.mxu0 0
          %1208 = vmatpush1.bf16.msra.mxu0 %v1191
          %1209 = vmatprep.subr.bf16.mxu0 0
          %1210 = vmatpush1.bf16.msra.mxu0 %v1192
          %1211 = vmatprep.subr.bf16.mxu0 0
          %1212 = vmatpush1.bf16.msra.mxu0 %v1193
          %1213 = vmatprep.subr.bf16.mxu0 0
          %1214 = vmatpush1.bf16.msra.mxu0 %v1194
          %1215 = vmatprep.subr.bf16.mxu0 0
          %1216 = vmatpush1.bf16.msra.mxu0 %v1195
          %1217 = vmatprep.subr.bf16.mxu0 0
          %1218 = vmatpush1.bf16.msra.mxu0 %v1196
          %1219 = vmatprep.subr.bf16.mxu0 0
          %1220 = vmatpush1.bf16.msra.mxu0 %v1197
          %1221 = vmatprep.subr.bf16.mxu0 0
          %1222 = vmatpush1.bf16.msra.mxu0 %v1198
          %1223 = vmatprep.subr.bf16.mxu0 0
          %1224 = vmatpush1.bf16.msra.mxu0 0
          %1225 = vmatprep.subr.bf16.mxu0 0
          %1226 = vmatpush1.bf16.msra.mxu0 0
          %1227 = vmatprep.subr.bf16.mxu0 0
          %1228 = vmatpush1.bf16.msra.mxu0 0
          %1229 = vmatprep.subr.bf16.mxu0 0
          %1230 = vmatpush1.bf16.msra.mxu0 0
          %1231 = vmatprep.subr.bf16.mxu0 0
          %1232 = vmatpush1.bf16.msra.mxu0 0
          %1233 = vmatprep.subr.bf16.mxu0 0
          %1234 = vmatpush1.bf16.msra.mxu0 0
          %1235 = vmatprep.subr.bf16.mxu0 0
          %1236 = vmatpush1.bf16.msra.mxu0 0
          %1237 = vmatprep.subr.bf16.mxu0 0
          %1238 = vmatpush1.bf16.msra.mxu0 0
          %1239 = vmatprep.mubr.bf16.mxu0 0
          %1240 = vmatmul.mubr.bf16.gmra.mrb[0].mxu0 %v1128
          %v1241 = vpop.f32.mrb[0].mxu0
          %v1242 = vadd.f32 %v1157, %v1241
          %v1243 = vpop.f32.mrb[0].mxu0
          %v1244 = vpop.f32.mrb[0].mxu0
          %v1245 = vadd.f32 %v1157, %v1244
          %v1246 = vpop.f32.mrb[0].mxu0
          %1247 = vmatprep.mubr.bf16.mxu0 0
          %1248 = vmatmul.mubr.bf16.gmra.mrb[0].mxu0 %v1129
          %v1249 = vpop.f32.mrb[0].mxu0
          %v1250 = vadd.f32 %v1157, %v1249
          %v1251 = vpop.f32.mrb[0].mxu0
          %v1252 = vpop.f32.mrb[0].mxu0
          %v1253 = vadd.f32 %v1157, %v1252
          %v1254 = vpop.f32.mrb[0].mxu0
          %1255 = vmatprep.mubr.bf16.mxu0 0
          %1256 = vmatmul.mubr.bf16.gmra.mrb[0].mxu0 %v1130
          %v1257 = vpop.f32.mrb[0].mxu0
          %v1258 = vadd.f32 %v1157, %v1257
          %v1259 = vpop.f32.mrb[0].mxu0
          %v1260 = vpop.f32.mrb[0].mxu0
          %v1261 = vadd.f32 %v1157, %v1260
          %v1262 = vpop.f32.mrb[0].mxu0
          %1263 = vmatprep.mubr.bf16.mxu0 0
          %1264 = vmatmul.mubr.bf16.gmra.mrb[0].mxu0 %v1131
          %v1265 = vpop.f32.mrb[0].mxu0
          %v1266 = vadd.f32 %v1157, %v1265
          %v1267 = vpop.f32.mrb[0].mxu0
          %v1268 = vpop.f32.mrb[0].mxu0
          %v1269 = vadd.f32 %v1157, %v1268
          %v1270 = vpop.f32.mrb[0].mxu0
          %1271 = vmatprep.mubr.bf16.mxu0 0
          %1272 = vmatmul.mubr.bf16.gmra.mrb[0].mxu0 %v1132
          %v1273 = vpop.f32.mrb[0].mxu0
          %v1274 = vadd.f32 %v1157, %v1273
          %v1275 = vpop.f32.mrb[0].mxu0
          %v1276 = vpop.f32.mrb[0].mxu0
          %v1277 = vadd.f32 %v1157, %v1276
          %v1278 = vpop.f32.mrb[0].mxu0
          %1279 = vmatprep.mubr.bf16.mxu0 0
          %1280 = vmatmul.mubr.bf16.gmra.mrb[0].mxu0 %v1133
          %v1281 = vpop.f32.mrb[0].mxu0
          %v1282 = vadd.f32 %v1157, %v1281
          %v1283 = vpop.f32.mrb[0].mxu0
          %v1284 = vpop.f32.mrb[0].mxu0
          %v1285 = vadd.f32 %v1157, %v1284
          %v1286 = vpop.f32.mrb[0].mxu0
          %1287 = vmatprep.mubr.bf16.mxu0 0
          %1288 = vmatmul.mubr.bf16.gmra.mrb[0].mxu0 %v1134
          %v1289 = vpop.f32.mrb[0].mxu0
          %v1290 = vadd.f32 %v1157, %v1289
          %v1291 = vpop.f32.mrb[0].mxu0
          %v1292 = vpop.f32.mrb[0].mxu0
          %v1293 = vadd.f32 %v1157, %v1292
          %v1294 = vpop.f32.mrb[0].mxu0
          %1295 = vmatprep.mubr.bf16.mxu0 0
          %1296 = vmatmul.mubr.bf16.gmra.mrb[0].mxu0 %v1135
          %v1297 = vpop.f32.mrb[0].mxu0
          %v1298 = vadd.f32 %v1157, %v1297
          %v1299 = vpop.f32.mrb[0].mxu0
          %v1300 = vpop.f32.mrb[0].mxu0
          %v1301 = vadd.f32 %v1157, %v1300
          %v1302 = vpop.f32.mrb[0].mxu0
          %1303 = vdwg.mxu0
          %1304 = vst [vmem:[%s380] sm:$0xff] %v1242
          %1305 = vst [vmem:[%s380 + $0x8] sm:$0xff] %v1245
          %1306 = vst [vmem:[%s380 + $0x10] sm:$0xff] %v1250
          %1307 = vst [vmem:[%s380 + $0x18] sm:$0xff] %v1253
          %1308 = vst [vmem:[%s380 + $0x20] sm:$0xff] %v1258
          %1309 = vst [vmem:[%s380 + $0x28] sm:$0xff] %v1261
          %1310 = vst [vmem:[%s380 + $0x30] sm:$0xff] %v1266
          %1311 = vst [vmem:[%s380 + $0x38] sm:$0xff] %v1269
          %1312 = vst [vmem:[%s380 + $0x40] sm:$0xff] %v1274
          %1313 = vst [vmem:[%s380 + $0x48] sm:$0xff] %v1277
          %1314 = vst [vmem:[%s380 + $0x50] sm:$0xff] %v1282
          %1315 = vst [vmem:[%s380 + $0x58] sm:$0xff] %v1285
          %1316 = vst [vmem:[%s380 + $0x60] sm:$0xff] %v1290
          %1317 = vst [vmem:[%s380 + $0x68] sm:$0xff] %v1293
          %1318 = vst [vmem:[%s380 + $0x70] sm:$0xff] %v1298
          %1319 = vst [vmem:[%s380 + $0x78] sm:$0xff] %v1301
        $region76: #{tpu_custom_call.1} parent=51 // pred_fallthru
          _
        %s1320 = sand.u32 %s221, 1
        %s1321 = scalar_lea.sflag [#allocation6], %s1320
        %s1322 = sand.u32 %s221, 1
        %s1323 = smul.addr %s1322, 128
        %s1324 = scalar_lea.vmem [#allocation12], %s1323
        // Predicated region
        $region77: #{tpu_custom_call.1} parent=51 // pred_check
          %p1325 = pneg %p231
        $region78: #{tpu_custom_call.1} parent=51 // pred_check_branch
          %1327 = sbr.rel (%p1325) target = $region80
        $region79: #{tpu_custom_call.1} parent=51 // pred_region
          %s1329 = ssub.s32 2048, 2048
          %1330 = vsyncadd %s1321, %s1329
          %s1331 = smul.addr %s32, 16
          %s1332 = smul.addr %s1331, 128
          %s1333 = scalar_lea.hbm %s8, %s1332
          %s1334 = sshll.u32 %s1324, 4
          %s1335 = int_to_ptr.vmem [resolvable:$true] %s1334
          %1340 = dma.vmem_to_hbm [thread:$0]  %s1335, 2048, %s1333, %s1321, 128, 128, 8
        $region80: #{tpu_custom_call.1} parent=51 // pred_fallthru
          _
      $region52: #{tpu_custom_call.1} parent=5 // pred_fallthru
        _
      %p1341 = scmp.le.s32.totalorder 2, %s23
      // Predicated region
      $region81: #{tpu_custom_call.1} parent=5 // pred_check
        %p1342 = pneg %p1341
      $region82: #{tpu_custom_call.1} parent=5 // pred_check_branch
        %1344 = sbr.rel (%p1342) target = $region84
      $region83: #{tpu_custom_call.1} parent=5 // pred_region
        %s1345 = ssub.s32 %s23, 2
        // Predicated region
        $region85: #{tpu_custom_call.1} parent=83 // pred_check
          %p1346 = pneg %p237
        $region86: #{tpu_custom_call.1} parent=83 // pred_check_branch
          %1348 = sbr.rel (%p1346) target = $region88
        $region87: #{tpu_custom_call.1} parent=83 // pred_region
          %s1349 = sand.u32 %s222, 1
          %s1350 = scalar_lea.sflag [#allocation6], %s1349
          %s1351 = sand.u32 %s222, 1
          %s1352 = smul.addr %s1351, 128
          %s1353 = scalar_lea.vmem [#allocation12], %s1352
          %1354 = dma.done %s1350, 2048
        $region88: #{tpu_custom_call.1} parent=83 // pred_fallthru
          _
      $region84: #{tpu_custom_call.1} parent=5 // pred_fallthru
        _
    $region6: #{tpu_custom_call.1} parent=1 // loop_footer
      %s27 = sadd.s32 1, %s23
    $region7: #{tpu_custom_call.1} parent=1 // loop_footer_branch
      %22 = sbr.rel target = $region3
    $region8: #{tpu_custom_call.1} parent=1 // loop_exit
      _
    %1355 = vsyncpa [#allocation5], 1
    %s1356 = scalar_lea.sflag [#allocation5], 1
    %1357 = vsyncpa %s1356, 1
    %1358 = vsyncpa [#allocation8], 1
    %1359 = vsyncpa [#allocation11], 1
    %1360 = vsyncpa [#allocation6], 1
    %s1361 = scalar_lea.sflag [#allocation6], 1
    %1362 = vsyncpa %s1361, 1

</llo_original>
